<compile_context>
chip_gen: v6e
topology: v6e:2x2x1
jax: 0.10.0
libtpu: 0.0.40
codegen_flags: <defaults>
</compile_context>

<pallas_src>
import jax
import jax.numpy as jnp
from jax.experimental import pallas as pl
from jax.experimental.pallas import tpu as pltpu


def _round_up(n, m):
    return ((n + m - 1) // m) * m


def _discriminator_kernel(x_ref, w1_ref, b1_ref, w2_ref, b2_ref,
                          w3_ref, b3_ref, o_ref):
    x = x_ref[...]                                                  # [TB, 784] bf16

    # Linear(784, 256) + LeakyReLU(0.2)   (bf16 MXU, f32 accumulate)
    h1 = jnp.dot(x, w1_ref[...], preferred_element_type=jnp.float32)
    h1 = h1 + b1_ref[...]                                           # [TB, 256] f32
    h1 = jnp.where(h1 > 0, h1, 0.2 * h1)

    # Linear(256, 256) + LeakyReLU(0.2)
    h2 = jnp.dot(h1.astype(jnp.bfloat16), w2_ref[...],
                 preferred_element_type=jnp.float32)
    h2 = h2 + b2_ref[...]                                           # [TB, 256] f32
    h2 = jnp.where(h2 > 0, h2, 0.2 * h2)

    # Linear(256, 1): VPU multiply + lane reduction (no N=1 MXU matmul)
    w3_row = w3_ref[...].astype(jnp.float32)                        # [1, 256]
    z = jnp.sum(h2 * w3_row, axis=-1, keepdims=True) + b3_ref[0, 0] # [TB, 1]

    # Sigmoid: exp + reciprocal both on the EUP slot.
    o_ref[...] = pl.reciprocal(1.0 + jnp.exp(-z), approx=True)


def discriminator_forward(x, params, *, tile_b=1024):
    """x: [B, 784] float32.  params: dict with weights in [in, out] layout."""
    B, F = x.shape
    assert F == 784, F

    # bf16 weights / activations (f32 accumulation happens in the kernel).
    w1 = params["w1"].astype(jnp.bfloat16)                 # [784, 256]
    w2 = params["w2"].astype(jnp.bfloat16)                 # [256, 256]
    w3 = params["w3"].reshape(1, 256).astype(jnp.bfloat16) # row layout [1, 256]
    b1 = params["b1"].reshape(1, 256).astype(jnp.float32)
    b2 = params["b2"].reshape(1, 256).astype(jnp.float32)
    b3 = params["b3"].reshape(1, 1).astype(jnp.float32)    # scalar -> SMEM

    # Batch tiling: multiple of 128 rows, no bigger than needed for small B.
    tile_b = _round_up(max(int(tile_b), 128), 128)
    tile_b = min(tile_b, _round_up(max(B, 1), 128))
    b_pad = _round_up(B, tile_b)
    num_tiles = b_pad // tile_b

    x_bf = x.astype(jnp.bfloat16)
    if b_pad != B:
        x_bf = jnp.pad(x_bf, ((0, b_pad - B), (0, 0)))

    flops = 2 * b_pad * (784 * 256 + 256 * 256 + 256)
    bytes_accessed = int(x_bf.size * 2 + w1.size * 2 + w2.size * 2 + w3.size * 2
                         + (b1.size + b2.size + b3.size) * 4 + b_pad * 4)

    out = pl.pallas_call(
        _discriminator_kernel,
        out_shape=jax.ShapeDtypeStruct((b_pad, 1), jnp.float32),
        grid=(num_tiles,),
        in_specs=[
            pl.BlockSpec((tile_b, 784), lambda i: (i, 0)),    # x tile (pipelined)
            pl.BlockSpec((784, 256), lambda i: (0, 0)),       # w1 (VMEM-resident)
            pl.BlockSpec((1, 256), lambda i: (0, 0)),         # b1
            pl.BlockSpec((256, 256), lambda i: (0, 0)),       # w2
            pl.BlockSpec((1, 256), lambda i: (0, 0)),         # b2
            pl.BlockSpec((1, 256), lambda i: (0, 0)),         # w3 row
            pl.BlockSpec(memory_space=pltpu.MemorySpace.SMEM),# b3 scalar
        ],
        out_specs=pl.BlockSpec((tile_b, 1), lambda i: (i, 0)),
        compiler_params=pltpu.CompilerParams(
            dimension_semantics=("parallel",),
            vmem_limit_bytes=32 * 1024 * 1024,
        ),
        cost_estimate=pl.CostEstimate(
            flops=int(flops),
            transcendentals=int(2 * b_pad),
            bytes_accessed=bytes_accessed,
        ),
    )(x_bf, w1, b1, w2, b2, w3, b3)

    return out[:B]


def init_params(key):
    """Deterministic synthetic parameters matching nn.Linear shapes.
    PyTorch stores weight as [out, in]; we keep the transposed [in, out]
    layout so the kernel can do x @ W directly."""
    k1, k2, k3, k4, k5, k6 = jax.random.split(key, 6)

    def uniform(k, shape, fan_in):
        bound = 1.0 / jnp.sqrt(fan_in)
        return jax.random.uniform(k, shape, jnp.float32, -bound, bound)

    return {
        "w1": uniform(k1, (784, 256), 784.0),
        "b1": uniform(k2, (1, 256), 784.0),
        "w2": uniform(k3, (256, 256), 256.0),
        "b2": uniform(k4, (1, 256), 256.0),
        "w3": uniform(k5, (256, 1), 256.0),
        "b3": uniform(k6, (1, 1), 256.0),
    }


def _reference_forward(x, p):
    """f32 reference on the same bf16-rounded x / weights the kernel sees."""
    hi = jax.lax.Precision.HIGHEST
    r = lambda a: a.astype(jnp.bfloat16).astype(jnp.float32)
    h1 = jnp.dot(r(x), r(p["w1"]), precision=hi) + p["b1"].reshape(1, -1)
    h1 = jnp.where(h1 > 0, h1, 0.2 * h1)
    h2 = jnp.dot(h1, r(p["w2"]), precision=hi) + p["b2"].reshape(1, -1)
    h2 = jnp.where(h2 > 0, h2, 0.2 * h2)
    z = jnp.dot(h2, r(p["w3"]).reshape(-1, 1), precision=hi) + p["b3"].reshape(1, 1)
    return jax.nn.sigmoid(z)


if __name__ == "__main__":
    key = jax.random.PRNGKey(0)
    kx, kp = jax.random.split(key)

    # Small toy batch (non-multiple of the tile to exercise tail padding and
    # several grid steps).  Real inference batches should use the default
    # tile_b=1024 for full MXU row occupancy.
    B = 300
    x = jax.random.normal(kx, (B, 784), jnp.float32)
    params = init_params(kp)

    out = discriminator_forward(x, params, tile_b=128)
    out = jax.block_until_ready(out)

    ref = _reference_forward(x, params)
    assert out.shape == (B, 1), out.shape
    assert bool(jnp.all(jnp.isfinite(out))), "non-finite output"
    max_err = float(jnp.max(jnp.abs(out - ref)))
    assert max_err < 1e-2, f"mismatch vs reference: max abs err {max_err}"

    print("KERNEL_OK")
</pallas_src>

<mosaic_0001>
module attributes {stable_mosaic.version = 11 : i64} {
  func.func @_discriminator_kernel(%arg0: i32, %arg1: memref<128x784xbf16, #tpu.memory_space<vmem>>, %arg2: memref<784x256xbf16, #tpu.memory_space<vmem>>, %arg3: memref<1x256xf32, #tpu.memory_space<vmem>>, %arg4: memref<256x256xbf16, #tpu.memory_space<vmem>>, %arg5: memref<1x256xf32, #tpu.memory_space<vmem>>, %arg6: memref<1x256xbf16, #tpu.memory_space<vmem>>, %arg7: memref<1x1xf32, #tpu.memory_space<smem>>, %arg8: memref<128x1xf32, #tpu.memory_space<vmem>>) attributes {dimension_semantics = [#tpu.dimension_semantics<parallel>], iteration_bounds = array<i64: 3>, scalar_prefetch = 0 : i64, scratch_operands = 0 : i64, tpu.core_type = #tpu.core_type<tc>, window_params = [{transform_indices = @transform_0, window_bounds = array<i64: 128, 784>}, {pipeline_mode = #tpu.pipeline_mode<synchronous>, transform_indices = @transform_1, window_bounds = array<i64: 784, 256>}, {pipeline_mode = #tpu.pipeline_mode<synchronous>, transform_indices = @transform_2, window_bounds = array<i64: 1, 256>}, {pipeline_mode = #tpu.pipeline_mode<synchronous>, transform_indices = @transform_3, window_bounds = array<i64: 256, 256>}, {pipeline_mode = #tpu.pipeline_mode<synchronous>, transform_indices = @transform_4, window_bounds = array<i64: 1, 256>}, {pipeline_mode = #tpu.pipeline_mode<synchronous>, transform_indices = @transform_5, window_bounds = array<i64: 1, 256>}, {transform_indices = @transform_6, window_bounds = array<i64: 1, 1>}, {transform_indices = @transform_7, window_bounds = array<i64: 128, 1>}]} {
    %c0 = arith.constant 0 : index
    %c0_0 = arith.constant 0 : index
    %0 = vector.load %arg1[%c0, %c0_0] : memref<128x784xbf16, #tpu.memory_space<vmem>>, vector<128x784xbf16>
    %c0_1 = arith.constant 0 : index
    %c0_2 = arith.constant 0 : index
    %1 = vector.load %arg2[%c0_1, %c0_2] : memref<784x256xbf16, #tpu.memory_space<vmem>>, vector<784x256xbf16>
    %cst = arith.constant dense<0.000000e+00> : vector<128x256xf32>
    %2 = tpu.matmul %0, %1, %cst {dimension_numbers = #tpu.dot_dimension_numbers<[1], [0], [0], [1], [0, 0, 1, 1], [], []>} : vector<128x784xbf16>, vector<784x256xbf16>, vector<128x256xf32> -> vector<128x256xf32>
    %c0_3 = arith.constant 0 : index
    %c0_4 = arith.constant 0 : index
    %3 = vector.load %arg3[%c0_3, %c0_4] : memref<1x256xf32, #tpu.memory_space<vmem>>, vector<1x256xf32>
    %4 = vector.broadcast %3 : vector<1x256xf32> to vector<128x256xf32>
    %5 = arith.addf %2, %4 : vector<128x256xf32>
    %cst_5 = arith.constant 0.000000e+00 : f32
    %6 = vector.broadcast %cst_5 : f32 to vector<128x256xf32>
    %7 = arith.cmpf ogt, %5, %6 : vector<128x256xf32>
    %cst_6 = arith.constant 2.000000e-01 : f32
    %8 = vector.broadcast %cst_6 : f32 to vector<128x256xf32>
    %9 = arith.mulf %8, %5 : vector<128x256xf32>
    %10 = arith.select %7, %5, %9 : vector<128x256xi1>, vector<128x256xf32>
    %11 = arith.truncf %10 : vector<128x256xf32> to vector<128x256xbf16>
    %c0_7 = arith.constant 0 : index
    %c0_8 = arith.constant 0 : index
    %12 = vector.load %arg4[%c0_7, %c0_8] : memref<256x256xbf16, #tpu.memory_space<vmem>>, vector<256x256xbf16>
    %cst_9 = arith.constant dense<0.000000e+00> : vector<128x256xf32>
    %13 = tpu.matmul %11, %12, %cst_9 {dimension_numbers = #tpu.dot_dimension_numbers<[1], [0], [0], [1], [0, 0, 1, 1], [], []>} : vector<128x256xbf16>, vector<256x256xbf16>, vector<128x256xf32> -> vector<128x256xf32>
    %c0_10 = arith.constant 0 : index
    %c0_11 = arith.constant 0 : index
    %14 = vector.load %arg5[%c0_10, %c0_11] : memref<1x256xf32, #tpu.memory_space<vmem>>, vector<1x256xf32>
    %15 = vector.broadcast %14 : vector<1x256xf32> to vector<128x256xf32>
    %16 = arith.addf %13, %15 : vector<128x256xf32>
    %cst_12 = arith.constant 0.000000e+00 : f32
    %17 = vector.broadcast %cst_12 : f32 to vector<128x256xf32>
    %18 = arith.cmpf ogt, %16, %17 : vector<128x256xf32>
    %cst_13 = arith.constant 2.000000e-01 : f32
    %19 = vector.broadcast %cst_13 : f32 to vector<128x256xf32>
    %20 = arith.mulf %19, %16 : vector<128x256xf32>
    %21 = arith.select %18, %16, %20 : vector<128x256xi1>, vector<128x256xf32>
    %c0_14 = arith.constant 0 : index
    %c0_15 = arith.constant 0 : index
    %22 = vector.load %arg6[%c0_14, %c0_15] : memref<1x256xbf16, #tpu.memory_space<vmem>>, vector<1x256xbf16>
    %23 = arith.extf %22 : vector<1x256xbf16> to vector<1x256xf32>
    %24 = vector.broadcast %23 : vector<1x256xf32> to vector<128x256xf32>
    %25 = arith.mulf %21, %24 : vector<128x256xf32>
    %cst_16 = arith.constant dense<0.000000e+00> : vector<128xf32>
    %26 = vector.multi_reduction <add>, %25, %cst_16 [1] : vector<128x256xf32> to vector<128xf32>
    %27 = vector.shape_cast %26 : vector<128xf32> to vector<128x1xf32>
    %c0_17 = arith.constant 0 : index
    %c0_18 = arith.constant 0 : index
    %28 = memref.load %arg7[%c0_17, %c0_18] : memref<1x1xf32, #tpu.memory_space<smem>>
    %29 = vector.broadcast %28 : f32 to vector<128x1xf32>
    %30 = arith.addf %27, %29 : vector<128x1xf32>
    %cst_19 = arith.constant 0.000000e+00 : f32
    %31 = vector.broadcast %cst_19 : f32 to vector<128x1xf32>
    %32 = arith.subf %31, %30 : vector<128x1xf32>
    %33 = math.exp %32 : vector<128x1xf32>
    %cst_20 = arith.constant 1.000000e+00 : f32
    %34 = vector.broadcast %cst_20 : f32 to vector<128x1xf32>
    %35 = arith.addf %34, %33 : vector<128x1xf32>
    %36 = tpu.reciprocal %35 {approx = true} : vector<128x1xf32> -> vector<128x1xf32>
    %c0_21 = arith.constant 0 : index
    %c0_22 = arith.constant 0 : index
    %37 = vector.load %arg8[%c0_21, %c0_22] : memref<128x1xf32, #tpu.memory_space<vmem>>, vector<128x1xf32>
    tpu.vector_store %arg8[%c0_21, %c0_22], %36 {strides = array<i32>} : memref<128x1xf32, #tpu.memory_space<vmem>>, vector<128x1xf32>,
    return
  }
  func.func @transform_0(%arg0: i32) -> (i32, i32) {
    %c0_i32 = arith.constant 0 : i32
    %c0_i32_0 = arith.constant 0 : i32
    return %arg0, %c0_i32 : i32, i32
  }
  func.func @transform_1(%arg0: i32) -> (i32, i32) {
    %c0_i32 = arith.constant 0 : i32
    %c0_i32_0 = arith.constant 0 : i32
    %c0_i32_1 = arith.constant 0 : i32
    return %c0_i32, %c0_i32_0 : i32, i32
  }
  func.func @transform_2(%arg0: i32) -> (i32, i32) {
    %c0_i32 = arith.constant 0 : i32
    %c0_i32_0 = arith.constant 0 : i32
    %c0_i32_1 = arith.constant 0 : i32
    return %c0_i32, %c0_i32_0 : i32, i32
  }
  func.func @transform_3(%arg0: i32) -> (i32, i32) {
    %c0_i32 = arith.constant 0 : i32
    %c0_i32_0 = arith.constant 0 : i32
    %c0_i32_1 = arith.constant 0 : i32
    return %c0_i32, %c0_i32_0 : i32, i32
  }
  func.func @transform_4(%arg0: i32) -> (i32, i32) {
    %c0_i32 = arith.constant 0 : i32
    %c0_i32_0 = arith.constant 0 : i32
    %c0_i32_1 = arith.constant 0 : i32
    return %c0_i32, %c0_i32_0 : i32, i32
  }
  func.func @transform_5(%arg0: i32) -> (i32, i32) {
    %c0_i32 = arith.constant 0 : i32
    %c0_i32_0 = arith.constant 0 : i32
    %c0_i32_1 = arith.constant 0 : i32
    return %c0_i32, %c0_i32_0 : i32, i32
  }
  func.func @transform_6(%arg0: i32) -> (i32, i32) {
    %c0_i32 = arith.constant 0 : i32
    %c0_i32_0 = arith.constant 0 : i32
    %c0_i32_1 = arith.constant 0 : i32
    return %c0_i32, %c0_i32_0 : i32, i32
  }
  func.func @transform_7(%arg0: i32) -> (i32, i32) {
    %c0_i32 = arith.constant 0 : i32
    %c0_i32_0 = arith.constant 0 : i32
    return %arg0, %c0_i32 : i32, i32
  }
}

</mosaic_0001>

<llo_original>
// kernel: tpu_custom_call.1
$region0: #{tpu_custom_call.1}
  #allocation0 [shape = 'u32[]', space=smem, size = 0x4, offset = 0x4, fixed_abs, tag = 'smem constant byte address 0x4 - core index']
  #allocation1 [shape = 'u32[144,128]{1,0:T(1,128)}', space=vmem, size = 0x12000, scoped, tag = 'internal scratch']
  #allocation2 [shape = 'f32[1,1]{1,0:T(1,128)S(6)}', space=smem, size = 0x200, scoped, tag = 'scoped memory for tpu_custom_call.1']
  %s0 = inlined_call_operand.vmem [shape: bf16[384,784], index: 0, kind: input, shape index: {}]
  %s1 = inlined_call_operand.vmem [shape: bf16[784,256], index: 1, kind: input, shape index: {}]
  %s2 = inlined_call_operand.vmem [shape: f32[1,256], index: 2, kind: input, shape index: {}]
  %s3 = inlined_call_operand.vmem [shape: bf16[256,256], index: 3, kind: input, shape index: {}]
  %s4 = inlined_call_operand.vmem [shape: f32[1,256], index: 4, kind: input, shape index: {}]
  %s5 = inlined_call_operand.vmem [shape: bf16[1,256], index: 5, kind: input, shape index: {}]
  %s6 = inlined_call_operand.<no memory space> [shape: f32[1,1], index: 6, kind: input, shape index: {}]
  %s7 = inlined_call_operand.vmem [shape: f32[384,1], index: 7, kind: output, shape index: {}]
  %s8 = sld [smem:[#allocation0]]
  $region61: #{tpu_custom_call.1} parent=0
    _
  %s10 = ssub.s32 1, %s8
  %s11 = scalar_select 0, %s10, %s8
  %12 = sst [smem:[#allocation2]] %s6
  loop: start=0, step=1, limit=5
  $region2: #{tpu_custom_call.1} parent=0 // loop_pre_header
    _
  $region3: #{tpu_custom_call.1} parent=0 // loop_header
    %s14 = sphi 0, %s18
    %p15 = scmp.ge.s32.totalorder %s14, 5
    %s24 = sphi 0, %s26
    %s27 = sphi 0, %s24
    %s28 = sphi 0, %s27
    %s44 = sphi 0, %s28
    %s48 = sphi 0, %s48
    %s50 = sphi 0, %s48
    %s51 = sphi 0, %s50
    %s65 = sphi 0, %s51
    %s69 = sphi 0, %s69
    %s71 = sphi 0, %s69
    %s72 = sphi 0, %s71
    %s86 = sphi 0, %s72
    %s90 = sphi 0, %s90
    %s92 = sphi 0, %s90
    %s93 = sphi 0, %s92
    %s107 = sphi 0, %s93
    %s111 = sphi 0, %s111
    %s113 = sphi 0, %s111
    %s114 = sphi 0, %s113
    %s128 = sphi 0, %s114
    %s132 = sphi 0, %s132
    %s134 = sphi 0, %s132
    %s135 = sphi 0, %s134
    %s149 = sphi 0, %s135
    %s153 = sphi 0, %s153
    %s155 = sphi 0, %s153
    %s156 = sphi 0, %s155
    %s170 = sphi 0, %s156
    %s176 = sphi 0, %s178
    %s179 = sphi 0, %s176
    %s180 = sphi 0, %s179
    %s196 = sphi 0, %s180
  $region4: #{tpu_custom_call.1} parent=0 // loop_header_branch
    %17 = sbr.rel (%p15) target = $region8
  $region5: #{tpu_custom_call.1} parent=0 // loop_body
    %s19 = ssub.s32 %s14, 1
    %s20 = ssub.s32 %s14, 2
    %s21 = sadd.s32 %s14, 1
    %s22 = ssub.s32 %s14, %s21
    %p23 = scmp.eq.s32.totalorder %s22, 0
    %s25 = sadd.s32 %s24, 1
    %s26 = scalar_select %p23, %s24, %s25
    %p29 = pneg %p23
    %p30 = scmp.eq.s32.totalorder %s14, 2
    %p31 = por %p29, %p30
    %p32 = scmp.ne.s32.totalorder %s24, %s27
    %p33 = scmp.eq.s32.totalorder %s14, 0
    %p34 = por %p32, %p33
    %p35 = scmp.ne.s32.totalorder %s24, %s27
    %p36 = scmp.eq.s32.totalorder %s19, 2
    %p37 = por %p35, %p36
    %p38 = scmp.ne.s32.totalorder %s27, %s28
    %p39 = scmp.eq.s32.totalorder %s19, 0
    %p40 = por %p38, %p39
    %p41 = scmp.ne.s32.totalorder %s27, %s28
    %p42 = scmp.eq.s32.totalorder %s20, 2
    %p43 = por %p41, %p42
    %p45 = scmp.ne.s32.totalorder %s28, %s44
    %p46 = scmp.eq.s32.totalorder %s20, 0
    %p47 = por %p45, %p46
    %s49 = sadd.s32 %s48, 1
    %p52 = scmp.eq.s32.totalorder %s14, 2
    %p53 = scmp.ne.s32.totalorder %s48, %s50
    %p54 = scmp.eq.s32.totalorder %s14, 0
    %p55 = por %p53, %p54
    %p56 = scmp.ne.s32.totalorder %s48, %s50
    %p57 = scmp.eq.s32.totalorder %s19, 2
    %p58 = por %p56, %p57
    %p59 = scmp.ne.s32.totalorder %s50, %s51
    %p60 = scmp.eq.s32.totalorder %s19, 0
    %p61 = por %p59, %p60
    %p62 = scmp.ne.s32.totalorder %s50, %s51
    %p63 = scmp.eq.s32.totalorder %s20, 2
    %p64 = por %p62, %p63
    %p66 = scmp.ne.s32.totalorder %s51, %s65
    %p67 = scmp.eq.s32.totalorder %s20, 0
    %p68 = por %p66, %p67
    %s70 = sadd.s32 %s69, 1
    %p73 = scmp.eq.s32.totalorder %s14, 2
    %p74 = scmp.ne.s32.totalorder %s69, %s71
    %p75 = scmp.eq.s32.totalorder %s14, 0
    %p76 = por %p74, %p75
    %p77 = scmp.ne.s32.totalorder %s69, %s71
    %p78 = scmp.eq.s32.totalorder %s19, 2
    %p79 = por %p77, %p78
    %p80 = scmp.ne.s32.totalorder %s71, %s72
    %p81 = scmp.eq.s32.totalorder %s19, 0
    %p82 = por %p80, %p81
    %p83 = scmp.ne.s32.totalorder %s71, %s72
    %p84 = scmp.eq.s32.totalorder %s20, 2
    %p85 = por %p83, %p84
    %p87 = scmp.ne.s32.totalorder %s72, %s86
    %p88 = scmp.eq.s32.totalorder %s20, 0
    %p89 = por %p87, %p88
    %s91 = sadd.s32 %s90, 1
    %p94 = scmp.eq.s32.totalorder %s14, 2
    %p95 = scmp.ne.s32.totalorder %s90, %s92
    %p96 = scmp.eq.s32.totalorder %s14, 0
    %p97 = por %p95, %p96
    %p98 = scmp.ne.s32.totalorder %s90, %s92
    %p99 = scmp.eq.s32.totalorder %s19, 2
    %p100 = por %p98, %p99
    %p101 = scmp.ne.s32.totalorder %s92, %s93
    %p102 = scmp.eq.s32.totalorder %s19, 0
    %p103 = por %p101, %p102
    %p104 = scmp.ne.s32.totalorder %s92, %s93
    %p105 = scmp.eq.s32.totalorder %s20, 2
    %p106 = por %p104, %p105
    %p108 = scmp.ne.s32.totalorder %s93, %s107
    %p109 = scmp.eq.s32.totalorder %s20, 0
    %p110 = por %p108, %p109
    %s112 = sadd.s32 %s111, 1
    %p115 = scmp.eq.s32.totalorder %s14, 2
    %p116 = scmp.ne.s32.totalorder %s111, %s113
    %p117 = scmp.eq.s32.totalorder %s14, 0
    %p118 = por %p116, %p117
    %p119 = scmp.ne.s32.totalorder %s111, %s113
    %p120 = scmp.eq.s32.totalorder %s19, 2
    %p121 = por %p119, %p120
    %p122 = scmp.ne.s32.totalorder %s113, %s114
    %p123 = scmp.eq.s32.totalorder %s19, 0
    %p124 = por %p122, %p123
    %p125 = scmp.ne.s32.totalorder %s113, %s114
    %p126 = scmp.eq.s32.totalorder %s20, 2
    %p127 = por %p125, %p126
    %p129 = scmp.ne.s32.totalorder %s114, %s128
    %p130 = scmp.eq.s32.totalorder %s20, 0
    %p131 = por %p129, %p130
    %s133 = sadd.s32 %s132, 1
    %p136 = scmp.eq.s32.totalorder %s14, 2
    %p137 = scmp.ne.s32.totalorder %s132, %s134
    %p138 = scmp.eq.s32.totalorder %s14, 0
    %p139 = por %p137, %p138
    %p140 = scmp.ne.s32.totalorder %s132, %s134
    %p141 = scmp.eq.s32.totalorder %s19, 2
    %p142 = por %p140, %p141
    %p143 = scmp.ne.s32.totalorder %s134, %s135
    %p144 = scmp.eq.s32.totalorder %s19, 0
    %p145 = por %p143, %p144
    %p146 = scmp.ne.s32.totalorder %s134, %s135
    %p147 = scmp.eq.s32.totalorder %s20, 2
    %p148 = por %p146, %p147
    %p150 = scmp.ne.s32.totalorder %s135, %s149
    %p151 = scmp.eq.s32.totalorder %s20, 0
    %p152 = por %p150, %p151
    %s154 = sadd.s32 %s153, 1
    %p157 = scmp.eq.s32.totalorder %s14, 2
    %p158 = scmp.ne.s32.totalorder %s153, %s155
    %p159 = scmp.eq.s32.totalorder %s14, 0
    %p160 = por %p158, %p159
    %p161 = scmp.ne.s32.totalorder %s153, %s155
    %p162 = scmp.eq.s32.totalorder %s19, 2
    %p163 = por %p161, %p162
    %p164 = scmp.ne.s32.totalorder %s155, %s156
    %p165 = scmp.eq.s32.totalorder %s19, 0
    %p166 = por %p164, %p165
    %p167 = scmp.ne.s32.totalorder %s155, %s156
    %p168 = scmp.eq.s32.totalorder %s20, 2
    %p169 = por %p167, %p168
    %p171 = scmp.ne.s32.totalorder %s156, %s170
    %p172 = scmp.eq.s32.totalorder %s20, 0
    %p173 = por %p171, %p172
    %s174 = ssub.s32 %s14, %s21
    %p175 = scmp.eq.s32.totalorder %s174, 0
    %s177 = sadd.s32 %s176, 1
    %s178 = scalar_select %p175, %s176, %s177
    %p181 = pneg %p175
    %p182 = scmp.eq.s32.totalorder %s14, 2
    %p183 = por %p181, %p182
    %p184 = scmp.ne.s32.totalorder %s176, %s179
    %p185 = scmp.eq.s32.totalorder %s14, 0
    %p186 = por %p184, %p185
    %p187 = scmp.ne.s32.totalorder %s176, %s179
    %p188 = scmp.eq.s32.totalorder %s19, 2
    %p189 = por %p187, %p188
    %p190 = scmp.ne.s32.totalorder %s179, %s180
    %p191 = scmp.eq.s32.totalorder %s19, 0
    %p192 = por %p190, %p191
    %p193 = scmp.ne.s32.totalorder %s179, %s180
    %p194 = scmp.eq.s32.totalorder %s20, 2
    %p195 = por %p193, %p194
    %p197 = scmp.ne.s32.totalorder %s180, %s196
    %p198 = scmp.eq.s32.totalorder %s20, 0
    %p199 = por %p197, %p198
    %p200 = scmp.le.s32.totalorder 1, %s14
    %p201 = scmp.lt.s32.totalorder %s14, 4
    %p202 = pnand %p200, %p201
    %p203 = pneg %p202
    // Predicated region
    $region9: #{tpu_custom_call.1} parent=5 // pred_check
      _
    $region10: #{tpu_custom_call.1} parent=5 // pred_check_branch
      %205 = sbr.rel (%p202) target = $region12
    $region11: #{tpu_custom_call.1} parent=5 // pred_region
      %s206 = ssub.s32 %s14, 1
      // Predicated region
      $region13: #{tpu_custom_call.1} parent=11 // pred_check
        %p207 = pneg %p61
      $region14: #{tpu_custom_call.1} parent=11 // pred_check_branch
        %209 = sbr.rel (%p207) target = $region16
      $region15: #{tpu_custom_call.1} parent=11 // pred_region
        _
      $region16: #{tpu_custom_call.1} parent=11 // pred_fallthru
        _
      // Predicated region
      $region17: #{tpu_custom_call.1} parent=11 // pred_check
        %p210 = pneg %p82
      $region18: #{tpu_custom_call.1} parent=11 // pred_check_branch
        %212 = sbr.rel (%p210) target = $region20
      $region19: #{tpu_custom_call.1} parent=11 // pred_region
        _
      $region20: #{tpu_custom_call.1} parent=11 // pred_fallthru
        _
      // Predicated region
      $region21: #{tpu_custom_call.1} parent=11 // pred_check
        %p213 = pneg %p103
      $region22: #{tpu_custom_call.1} parent=11 // pred_check_branch
        %215 = sbr.rel (%p213) target = $region24
      $region23: #{tpu_custom_call.1} parent=11 // pred_region
        _
      $region24: #{tpu_custom_call.1} parent=11 // pred_fallthru
        _
      // Predicated region
      $region25: #{tpu_custom_call.1} parent=11 // pred_check
        %p216 = pneg %p124
      $region26: #{tpu_custom_call.1} parent=11 // pred_check_branch
        %218 = sbr.rel (%p216) target = $region28
      $region27: #{tpu_custom_call.1} parent=11 // pred_region
        _
      $region28: #{tpu_custom_call.1} parent=11 // pred_fallthru
        _
      // Predicated region
      $region29: #{tpu_custom_call.1} parent=11 // pred_check
        %p219 = pneg %p145
      $region30: #{tpu_custom_call.1} parent=11 // pred_check_branch
        %221 = sbr.rel (%p219) target = $region32
      $region31: #{tpu_custom_call.1} parent=11 // pred_region
        _
      $region32: #{tpu_custom_call.1} parent=11 // pred_fallthru
        _
      // Predicated region
      $region33: #{tpu_custom_call.1} parent=11 // pred_check
        %p222 = pneg %p166
      $region34: #{tpu_custom_call.1} parent=11 // pred_check_branch
        %224 = sbr.rel (%p222) target = $region36
      $region35: #{tpu_custom_call.1} parent=11 // pred_region
        _
      $region36: #{tpu_custom_call.1} parent=11 // pred_fallthru
        _
    $region12: #{tpu_custom_call.1} parent=5 // pred_fallthru
      _
    %p225 = scmp.lt.s32.totalorder %s14, 3
    // Predicated region
    $region37: #{tpu_custom_call.1} parent=5 // pred_check
      %p226 = pneg %p225
    $region38: #{tpu_custom_call.1} parent=5 // pred_check_branch
      %228 = sbr.rel (%p226) target = $region40
    $region39: #{tpu_custom_call.1} parent=5 // pred_region
      // Predicated region
      $region41: #{tpu_custom_call.1} parent=39 // pred_check
        %p229 = pneg %p34
      $region42: #{tpu_custom_call.1} parent=39 // pred_check_branch
        %231 = sbr.rel (%p229) target = $region44
      $region43: #{tpu_custom_call.1} parent=39 // pred_region
        %s232 = smul.u32 16, %s14
        %p233 = scmp.lt.s32.totalorder %s232, 47
        %s234 = scalar_select %p233, %s232, 47
        %s235 = smul.addr %s234, 7
        %s236 = smul.addr %s235, 4
        %s237 = scalar_lea.vmem %s0, %s236
        %s238 = smul.u32 16, %s14
      $region44: #{tpu_custom_call.1} parent=39 // pred_fallthru
        _
    $region40: #{tpu_custom_call.1} parent=5 // pred_fallthru
      _
    %p239 = scmp.le.s32.totalorder 1, %s14
    %p240 = scmp.lt.s32.totalorder %s14, 4
    %p241 = pnand %p239, %p240
    %p242 = pneg %p241
    // Predicated region
    $region45: #{tpu_custom_call.1} parent=5 // pred_check
      _
    $region46: #{tpu_custom_call.1} parent=5 // pred_check_branch
      %244 = sbr.rel (%p241) target = $region48
    $region47: #{tpu_custom_call.1} parent=5 // pred_region
      %s245 = ssub.s32 %s14, 1
      %s246 = smul.u32 16, %s19
      %p247 = scmp.lt.s32.totalorder %s246, 47
      %s248 = scalar_select %p247, %s246, 47
      %s249 = smul.addr %s248, 7
      %s250 = smul.addr %s249, 4
      %s251 = scalar_lea.vmem %s0, %s250
      %p252 = pneg %p40
      %p253 = pneg %p37
      %p254 = pneg %p61
      %p255 = pneg %p58
      %p256 = pneg %p82
      %p257 = pneg %p79
      %p258 = pneg %p103
      %p259 = pneg %p100
      %p260 = pneg %p124
      %p261 = pneg %p121
      %p262 = pneg %p145
      %p263 = pneg %p142
      %p264 = pneg %p166
      %p265 = pneg %p163
      %p266 = pneg %p192
      %p267 = pneg %p189
      %s268 = smul.u32 16, %s19
      %p269 = scmp.lt.s32.totalorder %s268, 47
      %s270 = scalar_select %p269, %s268, 47
      %s271 = smul.addr %s270, 8
      %s272 = scalar_lea.vmem %s7, %s271
      %s273 = smul.u32 16, %s19
      %p274 = scmp.lt.s32.totalorder %s273, 47
      %s275 = scalar_select %p274, %s273, 47
      %s276 = smul.addr %s275, 7
      %s277 = smul.addr %s276, 4
      %s278 = scalar_lea.vmem %s0, %s277
      %s279 = smul.u32 16, %s19
      %s280 = smul.u32 16, %s19
      %p281 = scmp.lt.s32.totalorder %s280, 47
      %s282 = scalar_select %p281, %s280, 47
      %s283 = smul.addr %s282, 8
      %s284 = scalar_lea.vmem %s7, %s283
      %s285 = smul.u32 16, %s19
      %v287 = vld [vmem:[%s278] sm:$0xff]
      %v288 = vld [vmem:[%s278 + $0x8] sm:$0xff]
      %v289 = vld [vmem:[%s278 + $0x10] sm:$0xff]
      %v290 = vld [vmem:[%s278 + $0x18] sm:$0xf]
      %v291 = vld [vmem:[%s278 + $0x1c] sm:$0xff]
      %v292 = vld [vmem:[%s278 + $0x24] sm:$0xff]
      %v293 = vld [vmem:[%s278 + $0x2c] sm:$0xff]
      %v294 = vld [vmem:[%s278 + $0x34] sm:$0xf]
      %v295 = vld [vmem:[%s278 + $0x38] sm:$0xff]
      %v296 = vld [vmem:[%s278 + $0x40] sm:$0xff]
      %v297 = vld [vmem:[%s278 + $0x48] sm:$0xff]
      %v298 = vld [vmem:[%s278 + $0x50] sm:$0xf]
      %v299 = vld [vmem:[%s278 + $0x54] sm:$0xff]
      %v300 = vld [vmem:[%s278 + $0x5c] sm:$0xff]
      %v301 = vld [vmem:[%s278 + $0x64] sm:$0xff]
      %v302 = vld [vmem:[%s278 + $0x6c] sm:$0xf]
      %v303 = vld [vmem:[%s278 + $0x70] sm:$0xff]
      %v304 = vld [vmem:[%s278 + $0x78] sm:$0xff]
      %v305 = vld [vmem:[%s278 + $0x80] sm:$0xff]
      %v306 = vld [vmem:[%s278 + $0x88] sm:$0xf]
      %v307 = vld [vmem:[%s278 + $0x8c] sm:$0xff]
      %v308 = vld [vmem:[%s278 + $0x94] sm:$0xff]
      %v309 = vld [vmem:[%s278 + $0x9c] sm:$0xff]
      %v310 = vld [vmem:[%s278 + $0xa4] sm:$0xf]
      %v311 = vld [vmem:[%s278 + $0xa8] sm:$0xff]
      %v312 = vld [vmem:[%s278 + $0xb0] sm:$0xff]
      %v313 = vld [vmem:[%s278 + $0xb8] sm:$0xff]
      %v314 = vld [vmem:[%s278 + $0xc0] sm:$0xf]
      %v315 = vld [vmem:[%s278 + $0xc4] sm:$0xff]
      %v316 = vld [vmem:[%s278 + $0xcc] sm:$0xff]
      %v317 = vld [vmem:[%s278 + $0xd4] sm:$0xff]
      %v318 = vld [vmem:[%s278 + $0xdc] sm:$0xf]
      %v319 = vld [vmem:[%s278 + $0xe0] sm:$0xff]
      %v320 = vld [vmem:[%s278 + $0xe8] sm:$0xff]
      %v321 = vld [vmem:[%s278 + $0xf0] sm:$0xff]
      %v322 = vld [vmem:[%s278 + $0xf8] sm:$0xf]
      %v323 = vld [vmem:[%s278 + $0xfc] sm:$0xff]
      %v324 = vld [vmem:[%s278 + $0x104] sm:$0xff]
      %v325 = vld [vmem:[%s278 + $0x10c] sm:$0xff]
      %v326 = vld [vmem:[%s278 + $0x114] sm:$0xf]
      %v327 = vld [vmem:[%s278 + $0x118] sm:$0xff]
      %v328 = vld [vmem:[%s278 + $0x120] sm:$0xff]
      %v329 = vld [vmem:[%s278 + $0x128] sm:$0xff]
      %v330 = vld [vmem:[%s278 + $0x130] sm:$0xf]
      %v331 = vld [vmem:[%s278 + $0x134] sm:$0xff]
      %v332 = vld [vmem:[%s278 + $0x13c] sm:$0xff]
      %v333 = vld [vmem:[%s278 + $0x144] sm:$0xff]
      %v334 = vld [vmem:[%s278 + $0x14c] sm:$0xf]
      %v335 = vld [vmem:[%s278 + $0x150] sm:$0xff]
      %v336 = vld [vmem:[%s278 + $0x158] sm:$0xff]
      %v337 = vld [vmem:[%s278 + $0x160] sm:$0xff]
      %v338 = vld [vmem:[%s278 + $0x168] sm:$0xf]
      %v339 = vld [vmem:[%s278 + $0x16c] sm:$0xff]
      %v340 = vld [vmem:[%s278 + $0x174] sm:$0xff]
      %v341 = vld [vmem:[%s278 + $0x17c] sm:$0xff]
      %v342 = vld [vmem:[%s278 + $0x184] sm:$0xf]
      %v343 = vld [vmem:[%s278 + $0x188] sm:$0xff]
      %v344 = vld [vmem:[%s278 + $0x190] sm:$0xff]
      %v345 = vld [vmem:[%s278 + $0x198] sm:$0xff]
      %v346 = vld [vmem:[%s278 + $0x1a0] sm:$0xf]
      %v347 = vld [vmem:[%s278 + $0x1a4] sm:$0xff]
      %v348 = vld [vmem:[%s278 + $0x1ac] sm:$0xff]
      %v349 = vld [vmem:[%s278 + $0x1b4] sm:$0xff]
      %v350 = vld [vmem:[%s278 + $0x1bc] sm:$0xf]
      %v351 = vld [vmem:[%s1] sm:$0xff]
      %v352 = vld [vmem:[%s1 + $0x8] sm:$0xff]
      %v353 = vld [vmem:[%s1 + $0x10] sm:$0xff]
      %v354 = vld [vmem:[%s1 + $0x18] sm:$0xff]
      %v355 = vld [vmem:[%s1 + $0x20] sm:$0xff]
      %v356 = vld [vmem:[%s1 + $0x28] sm:$0xff]
      %v357 = vld [vmem:[%s1 + $0x30] sm:$0xff]
      %v358 = vld [vmem:[%s1 + $0x38] sm:$0xff]
      %v359 = vld [vmem:[%s1 + $0x40] sm:$0xff]
      %v360 = vld [vmem:[%s1 + $0x48] sm:$0xff]
      %v361 = vld [vmem:[%s1 + $0x50] sm:$0xff]
      %v362 = vld [vmem:[%s1 + $0x58] sm:$0xff]
      %v363 = vld [vmem:[%s1 + $0x60] sm:$0xff]
      %v364 = vld [vmem:[%s1 + $0x68] sm:$0xff]
      %v365 = vld [vmem:[%s1 + $0x70] sm:$0xff]
      %v366 = vld [vmem:[%s1 + $0x78] sm:$0xff]
      %v367 = vld [vmem:[%s1 + $0x80] sm:$0xff]
      %v368 = vld [vmem:[%s1 + $0x88] sm:$0xff]
      %v369 = vld [vmem:[%s1 + $0x90] sm:$0xff]
      %v370 = vld [vmem:[%s1 + $0x98] sm:$0xff]
      %v371 = vld [vmem:[%s1 + $0xa0] sm:$0xff]
      %v372 = vld [vmem:[%s1 + $0xa8] sm:$0xff]
      %v373 = vld [vmem:[%s1 + $0xb0] sm:$0xff]
      %v374 = vld [vmem:[%s1 + $0xb8] sm:$0xff]
      %v375 = vld [vmem:[%s1 + $0xc0] sm:$0xff]
      %v376 = vld [vmem:[%s1 + $0xc8] sm:$0xff]
      %v377 = vld [vmem:[%s1 + $0xd0] sm:$0xff]
      %v378 = vld [vmem:[%s1 + $0xd8] sm:$0xff]
      %v379 = vld [vmem:[%s1 + $0xe0] sm:$0xff]
      %v380 = vld [vmem:[%s1 + $0xe8] sm:$0xff]
      %v381 = vld [vmem:[%s1 + $0xf0] sm:$0xff]
      %v382 = vld [vmem:[%s1 + $0xf8] sm:$0xff]
      %v383 = vld [vmem:[%s1 + $0x100] sm:$0xff]
      %v384 = vld [vmem:[%s1 + $0x108] sm:$0xff]
      %v385 = vld [vmem:[%s1 + $0x110] sm:$0xff]
      %v386 = vld [vmem:[%s1 + $0x118] sm:$0xff]
      %v387 = vld [vmem:[%s1 + $0x120] sm:$0xff]
      %v388 = vld [vmem:[%s1 + $0x128] sm:$0xff]
      %v389 = vld [vmem:[%s1 + $0x130] sm:$0xff]
      %v390 = vld [vmem:[%s1 + $0x138] sm:$0xff]
      %v391 = vld [vmem:[%s1 + $0x140] sm:$0xff]
      %v392 = vld [vmem:[%s1 + $0x148] sm:$0xff]
      %v393 = vld [vmem:[%s1 + $0x150] sm:$0xff]
      %v394 = vld [vmem:[%s1 + $0x158] sm:$0xff]
      %v395 = vld [vmem:[%s1 + $0x160] sm:$0xff]
      %v396 = vld [vmem:[%s1 + $0x168] sm:$0xff]
      %v397 = vld [vmem:[%s1 + $0x170] sm:$0xff]
      %v398 = vld [vmem:[%s1 + $0x178] sm:$0xff]
      %v399 = vld [vmem:[%s1 + $0x180] sm:$0xff]
      %v400 = vld [vmem:[%s1 + $0x188] sm:$0xff]
      %v401 = vld [vmem:[%s1 + $0x190] sm:$0xff]
      %v402 = vld [vmem:[%s1 + $0x198] sm:$0xff]
      %v403 = vld [vmem:[%s1 + $0x1a0] sm:$0xff]
      %v404 = vld [vmem:[%s1 + $0x1a8] sm:$0xff]
      %v405 = vld [vmem:[%s1 + $0x1b0] sm:$0xff]
      %v406 = vld [vmem:[%s1 + $0x1b8] sm:$0xff]
      %v407 = vld [vmem:[%s1 + $0x1c0] sm:$0xff]
      %v408 = vld [vmem:[%s1 + $0x1c8] sm:$0xff]
      %v409 = vld [vmem:[%s1 + $0x1d0] sm:$0xff]
      %v410 = vld [vmem:[%s1 + $0x1d8] sm:$0xff]
      %v411 = vld [vmem:[%s1 + $0x1e0] sm:$0xff]
      %v412 = vld [vmem:[%s1 + $0x1e8] sm:$0xff]
      %v413 = vld [vmem:[%s1 + $0x1f0] sm:$0xff]
      %v414 = vld [vmem:[%s1 + $0x1f8] sm:$0xff]
      %v415 = vld [vmem:[%s1 + $0x200] sm:$0xff]
      %v416 = vld [vmem:[%s1 + $0x208] sm:$0xff]
      %v417 = vld [vmem:[%s1 + $0x210] sm:$0xff]
      %v418 = vld [vmem:[%s1 + $0x218] sm:$0xff]
      %v419 = vld [vmem:[%s1 + $0x220] sm:$0xff]
      %v420 = vld [vmem:[%s1 + $0x228] sm:$0xff]
      %v421 = vld [vmem:[%s1 + $0x230] sm:$0xff]
      %v422 = vld [vmem:[%s1 + $0x238] sm:$0xff]
      %v423 = vld [vmem:[%s1 + $0x240] sm:$0xff]
      %v424 = vld [vmem:[%s1 + $0x248] sm:$0xff]
      %v425 = vld [vmem:[%s1 + $0x250] sm:$0xff]
      %v426 = vld [vmem:[%s1 + $0x258] sm:$0xff]
      %v427 = vld [vmem:[%s1 + $0x260] sm:$0xff]
      %v428 = vld [vmem:[%s1 + $0x268] sm:$0xff]
      %v429 = vld [vmem:[%s1 + $0x270] sm:$0xff]
      %v430 = vld [vmem:[%s1 + $0x278] sm:$0xff]
      %v431 = vld [vmem:[%s1 + $0x280] sm:$0xff]
      %v432 = vld [vmem:[%s1 + $0x288] sm:$0xff]
      %v433 = vld [vmem:[%s1 + $0x290] sm:$0xff]
      %v434 = vld [vmem:[%s1 + $0x298] sm:$0xff]
      %v435 = vld [vmem:[%s1 + $0x2a0] sm:$0xff]
      %v436 = vld [vmem:[%s1 + $0x2a8] sm:$0xff]
      %v437 = vld [vmem:[%s1 + $0x2b0] sm:$0xff]
      %v438 = vld [vmem:[%s1 + $0x2b8] sm:$0xff]
      %v439 = vld [vmem:[%s1 + $0x2c0] sm:$0xff]
      %v440 = vld [vmem:[%s1 + $0x2c8] sm:$0xff]
      %v441 = vld [vmem:[%s1 + $0x2d0] sm:$0xff]
      %v442 = vld [vmem:[%s1 + $0x2d8] sm:$0xff]
      %v443 = vld [vmem:[%s1 + $0x2e0] sm:$0xff]
      %v444 = vld [vmem:[%s1 + $0x2e8] sm:$0xff]
      %v445 = vld [vmem:[%s1 + $0x2f0] sm:$0xff]
      %v446 = vld [vmem:[%s1 + $0x2f8] sm:$0xff]
      %v447 = vld [vmem:[%s1 + $0x300] sm:$0xff]
      %v448 = vld [vmem:[%s1 + $0x308] sm:$0xff]
      %v449 = vld [vmem:[%s2] sm:$0x3]
      %v451 = vlaneseq
      %v452 = vshrl.u32 %v451, 7
      %v453 = vsub.s32 0, %v452
      %v454 = vrot.slane %v449, %v453
      %v455 = vlaneseq
      %v456 = vshrl.u32 %v455, 7
      %v457 = vsub.s32 1, %v456
      %v458 = vrot.slane %v449, %v457
      %v525 = vunpack.c.l.b16 %v287
      %v526 = vunpack.c.h.b16 %v287
      %v527 = vunpack.c.l.b16 %v288
      %v528 = vunpack.c.h.b16 %v288
      %v529 = vunpack.c.l.b16 %v289
      %v530 = vunpack.c.h.b16 %v289
      %v531 = vunpack.c.l.b16 %v290
      %v532 = vunpack.c.l.b16 %v291
      %v533 = vunpack.c.h.b16 %v291
      %v534 = vunpack.c.l.b16 %v292
      %v535 = vunpack.c.h.b16 %v292
      %v536 = vunpack.c.l.b16 %v293
      %v537 = vunpack.c.h.b16 %v293
      %v538 = vunpack.c.l.b16 %v294
      %v539 = vunpack.c.l.b16 %v295
      %v540 = vunpack.c.h.b16 %v295
      %v541 = vunpack.c.l.b16 %v296
      %v542 = vunpack.c.h.b16 %v296
      %v543 = vunpack.c.l.b16 %v297
      %v544 = vunpack.c.h.b16 %v297
      %v545 = vunpack.c.l.b16 %v298
      %v546 = vunpack.c.l.b16 %v299
      %v547 = vunpack.c.h.b16 %v299
      %v548 = vunpack.c.l.b16 %v300
      %v549 = vunpack.c.h.b16 %v300
      %v550 = vunpack.c.l.b16 %v301
      %v551 = vunpack.c.h.b16 %v301
      %v552 = vunpack.c.l.b16 %v302
      %v553 = vunpack.c.l.b16 %v303
      %v554 = vunpack.c.h.b16 %v303
      %v555 = vunpack.c.l.b16 %v304
      %v556 = vunpack.c.h.b16 %v304
      %v557 = vunpack.c.l.b16 %v305
      %v558 = vunpack.c.h.b16 %v305
      %v559 = vunpack.c.l.b16 %v306
      %v560 = vunpack.c.l.b16 %v307
      %v561 = vunpack.c.h.b16 %v307
      %v562 = vunpack.c.l.b16 %v308
      %v563 = vunpack.c.h.b16 %v308
      %v564 = vunpack.c.l.b16 %v309
      %v565 = vunpack.c.h.b16 %v309
      %v566 = vunpack.c.l.b16 %v310
      %v567 = vunpack.c.l.b16 %v311
      %v568 = vunpack.c.h.b16 %v311
      %v569 = vunpack.c.l.b16 %v312
      %v570 = vunpack.c.h.b16 %v312
      %v571 = vunpack.c.l.b16 %v313
      %v572 = vunpack.c.h.b16 %v313
      %v573 = vunpack.c.l.b16 %v314
      %v574 = vunpack.c.l.b16 %v315
      %v575 = vunpack.c.h.b16 %v315
      %v576 = vunpack.c.l.b16 %v316
      %v577 = vunpack.c.h.b16 %v316
      %v578 = vunpack.c.l.b16 %v317
      %v579 = vunpack.c.h.b16 %v317
      %v580 = vunpack.c.l.b16 %v318
      %v581 = vunpack.c.l.b16 %v319
      %v582 = vunpack.c.h.b16 %v319
      %v583 = vunpack.c.l.b16 %v320
      %v584 = vunpack.c.h.b16 %v320
      %v585 = vunpack.c.l.b16 %v321
      %v586 = vunpack.c.h.b16 %v321
      %v587 = vunpack.c.l.b16 %v322
      %v588 = vunpack.c.l.b16 %v323
      %v589 = vunpack.c.h.b16 %v323
      %v590 = vunpack.c.l.b16 %v324
      %v591 = vunpack.c.h.b16 %v324
      %v592 = vunpack.c.l.b16 %v325
      %v593 = vunpack.c.h.b16 %v325
      %v594 = vunpack.c.l.b16 %v326
      %v595 = vunpack.c.l.b16 %v327
      %v596 = vunpack.c.h.b16 %v327
      %v597 = vunpack.c.l.b16 %v328
      %v598 = vunpack.c.h.b16 %v328
      %v599 = vunpack.c.l.b16 %v329
      %v600 = vunpack.c.h.b16 %v329
      %v601 = vunpack.c.l.b16 %v330
      %v602 = vunpack.c.l.b16 %v331
      %v603 = vunpack.c.h.b16 %v331
      %v604 = vunpack.c.l.b16 %v332
      %v605 = vunpack.c.h.b16 %v332
      %v606 = vunpack.c.l.b16 %v333
      %v607 = vunpack.c.h.b16 %v333
      %v608 = vunpack.c.l.b16 %v334
      %v609 = vunpack.c.l.b16 %v335
      %v610 = vunpack.c.h.b16 %v335
      %v611 = vunpack.c.l.b16 %v336
      %v612 = vunpack.c.h.b16 %v336
      %v613 = vunpack.c.l.b16 %v337
      %v614 = vunpack.c.h.b16 %v337
      %v615 = vunpack.c.l.b16 %v338
      %v616 = vunpack.c.l.b16 %v339
      %v617 = vunpack.c.h.b16 %v339
      %v618 = vunpack.c.l.b16 %v340
      %v619 = vunpack.c.h.b16 %v340
      %v620 = vunpack.c.l.b16 %v341
      %v621 = vunpack.c.h.b16 %v341
      %v622 = vunpack.c.l.b16 %v342
      %v623 = vunpack.c.l.b16 %v343
      %v624 = vunpack.c.h.b16 %v343
      %v625 = vunpack.c.l.b16 %v344
      %v626 = vunpack.c.h.b16 %v344
      %v627 = vunpack.c.l.b16 %v345
      %v628 = vunpack.c.h.b16 %v345
      %v629 = vunpack.c.l.b16 %v346
      %v630 = vunpack.c.l.b16 %v347
      %v631 = vunpack.c.h.b16 %v347
      %v632 = vunpack.c.l.b16 %v348
      %v633 = vunpack.c.h.b16 %v348
      %v634 = vunpack.c.l.b16 %v349
      %v635 = vunpack.c.h.b16 %v349
      %v636 = vunpack.c.l.b16 %v350
      %v637 = vpack.c.b16 %v532, %v525
      %v638 = vpack.c.b16 %v533, %v526
      %v639 = vpack.c.b16 %v534, %v527
      %v640 = vpack.c.b16 %v535, %v528
      %v641 = vpack.c.b16 %v536, %v529
      %v642 = vpack.c.b16 %v537, %v530
      %v643 = vpack.c.b16 %v538, %v531
      %v644 = vpack.c.b16 %v546, %v539
      %v645 = vpack.c.b16 %v547, %v540
      %v646 = vpack.c.b16 %v548, %v541
      %v647 = vpack.c.b16 %v549, %v542
      %v648 = vpack.c.b16 %v550, %v543
      %v649 = vpack.c.b16 %v551, %v544
      %v650 = vpack.c.b16 %v552, %v545
      %v651 = vpack.c.b16 %v560, %v553
      %v652 = vpack.c.b16 %v561, %v554
      %v653 = vpack.c.b16 %v562, %v555
      %v654 = vpack.c.b16 %v563, %v556
      %v655 = vpack.c.b16 %v564, %v557
      %v656 = vpack.c.b16 %v565, %v558
      %v657 = vpack.c.b16 %v566, %v559
      %v658 = vpack.c.b16 %v574, %v567
      %v659 = vpack.c.b16 %v575, %v568
      %v660 = vpack.c.b16 %v576, %v569
      %v661 = vpack.c.b16 %v577, %v570
      %v662 = vpack.c.b16 %v578, %v571
      %v663 = vpack.c.b16 %v579, %v572
      %v664 = vpack.c.b16 %v580, %v573
      %v665 = vpack.c.b16 %v588, %v581
      %v666 = vpack.c.b16 %v589, %v582
      %v667 = vpack.c.b16 %v590, %v583
      %v668 = vpack.c.b16 %v591, %v584
      %v669 = vpack.c.b16 %v592, %v585
      %v670 = vpack.c.b16 %v593, %v586
      %v671 = vpack.c.b16 %v594, %v587
      %v672 = vpack.c.b16 %v602, %v595
      %v673 = vpack.c.b16 %v603, %v596
      %v674 = vpack.c.b16 %v604, %v597
      %v675 = vpack.c.b16 %v605, %v598
      %v676 = vpack.c.b16 %v606, %v599
      %v677 = vpack.c.b16 %v607, %v600
      %v678 = vpack.c.b16 %v608, %v601
      %v679 = vpack.c.b16 %v616, %v609
      %v680 = vpack.c.b16 %v617, %v610
      %v681 = vpack.c.b16 %v618, %v611
      %v682 = vpack.c.b16 %v619, %v612
      %v683 = vpack.c.b16 %v620, %v613
      %v684 = vpack.c.b16 %v621, %v614
      %v685 = vpack.c.b16 %v622, %v615
      %v686 = vpack.c.b16 %v630, %v623
      %v687 = vpack.c.b16 %v631, %v624
      %v688 = vpack.c.b16 %v632, %v625
      %v689 = vpack.c.b16 %v633, %v626
      %v690 = vpack.c.b16 %v634, %v627
      %v691 = vpack.c.b16 %v635, %v628
      %v692 = vpack.c.b16 %v636, %v629
      %v839 = vunpack.c.l.b16 %v351
      %v840 = vunpack.c.h.b16 %v351
      %v841 = vunpack.c.l.b16 %v352
      %v842 = vunpack.c.h.b16 %v352
      %v843 = vunpack.c.l.b16 %v353
      %v844 = vunpack.c.h.b16 %v353
      %v845 = vunpack.c.l.b16 %v354
      %v846 = vunpack.c.h.b16 %v354
      %v847 = vunpack.c.l.b16 %v355
      %v848 = vunpack.c.h.b16 %v355
      %v849 = vunpack.c.l.b16 %v356
      %v850 = vunpack.c.h.b16 %v356
      %v851 = vunpack.c.l.b16 %v357
      %v852 = vunpack.c.h.b16 %v357
      %v853 = vunpack.c.l.b16 %v358
      %v854 = vunpack.c.h.b16 %v358
      %v855 = vunpack.c.l.b16 %v359
      %v856 = vunpack.c.h.b16 %v359
      %v857 = vunpack.c.l.b16 %v360
      %v858 = vunpack.c.h.b16 %v360
      %v859 = vunpack.c.l.b16 %v361
      %v860 = vunpack.c.h.b16 %v361
      %v861 = vunpack.c.l.b16 %v362
      %v862 = vunpack.c.h.b16 %v362
      %v863 = vunpack.c.l.b16 %v363
      %v864 = vunpack.c.h.b16 %v363
      %v865 = vunpack.c.l.b16 %v364
      %v866 = vunpack.c.h.b16 %v364
      %v867 = vunpack.c.l.b16 %v365
      %v868 = vunpack.c.h.b16 %v365
      %v869 = vunpack.c.l.b16 %v366
      %v870 = vunpack.c.h.b16 %v366
      %v871 = vunpack.c.l.b16 %v367
      %v872 = vunpack.c.h.b16 %v367
      %v873 = vunpack.c.l.b16 %v368
      %v874 = vunpack.c.h.b16 %v368
      %v875 = vunpack.c.l.b16 %v369
      %v876 = vunpack.c.h.b16 %v369
      %v877 = vunpack.c.l.b16 %v370
      %v878 = vunpack.c.h.b16 %v370
      %v879 = vunpack.c.l.b16 %v371
      %v880 = vunpack.c.h.b16 %v371
      %v881 = vunpack.c.l.b16 %v372
      %v882 = vunpack.c.h.b16 %v372
      %v883 = vunpack.c.l.b16 %v373
      %v884 = vunpack.c.h.b16 %v373
      %v885 = vunpack.c.l.b16 %v374
      %v886 = vunpack.c.h.b16 %v374
      %v887 = vunpack.c.l.b16 %v375
      %v888 = vunpack.c.h.b16 %v375
      %v889 = vunpack.c.l.b16 %v376
      %v890 = vunpack.c.h.b16 %v376
      %v891 = vunpack.c.l.b16 %v377
      %v892 = vunpack.c.h.b16 %v377
      %v893 = vunpack.c.l.b16 %v378
      %v894 = vunpack.c.h.b16 %v378
      %v895 = vunpack.c.l.b16 %v379
      %v896 = vunpack.c.h.b16 %v379
      %v897 = vunpack.c.l.b16 %v380
      %v898 = vunpack.c.h.b16 %v380
      %v899 = vunpack.c.l.b16 %v381
      %v900 = vunpack.c.h.b16 %v381
      %v901 = vunpack.c.l.b16 %v382
      %v902 = vunpack.c.h.b16 %v382
      %v903 = vunpack.c.l.b16 %v383
      %v904 = vunpack.c.h.b16 %v383
      %v905 = vunpack.c.l.b16 %v384
      %v906 = vunpack.c.h.b16 %v384
      %v907 = vunpack.c.l.b16 %v385
      %v908 = vunpack.c.h.b16 %v385
      %v909 = vunpack.c.l.b16 %v386
      %v910 = vunpack.c.h.b16 %v386
      %v911 = vunpack.c.l.b16 %v387
      %v912 = vunpack.c.h.b16 %v387
      %v913 = vunpack.c.l.b16 %v388
      %v914 = vunpack.c.h.b16 %v388
      %v915 = vunpack.c.l.b16 %v389
      %v916 = vunpack.c.h.b16 %v389
      %v917 = vunpack.c.l.b16 %v390
      %v918 = vunpack.c.h.b16 %v390
      %v919 = vunpack.c.l.b16 %v391
      %v920 = vunpack.c.h.b16 %v391
      %v921 = vunpack.c.l.b16 %v392
      %v922 = vunpack.c.h.b16 %v392
      %v923 = vunpack.c.l.b16 %v393
      %v924 = vunpack.c.h.b16 %v393
      %v925 = vunpack.c.l.b16 %v394
      %v926 = vunpack.c.h.b16 %v394
      %v927 = vunpack.c.l.b16 %v395
      %v928 = vunpack.c.h.b16 %v395
      %v929 = vunpack.c.l.b16 %v396
      %v930 = vunpack.c.h.b16 %v396
      %v931 = vunpack.c.l.b16 %v397
      %v932 = vunpack.c.h.b16 %v397
      %v933 = vunpack.c.l.b16 %v398
      %v934 = vunpack.c.h.b16 %v398
      %v935 = vunpack.c.l.b16 %v399
      %v936 = vunpack.c.h.b16 %v399
      %v937 = vunpack.c.l.b16 %v400
      %v938 = vunpack.c.h.b16 %v400
      %v939 = vunpack.c.l.b16 %v401
      %v940 = vunpack.c.h.b16 %v401
      %v941 = vunpack.c.l.b16 %v402
      %v942 = vunpack.c.h.b16 %v402
      %v943 = vunpack.c.l.b16 %v403
      %v944 = vunpack.c.h.b16 %v403
      %v945 = vunpack.c.l.b16 %v404
      %v946 = vunpack.c.h.b16 %v404
      %v947 = vunpack.c.l.b16 %v405
      %v948 = vunpack.c.h.b16 %v405
      %v949 = vunpack.c.l.b16 %v406
      %v950 = vunpack.c.h.b16 %v406
      %v951 = vunpack.c.l.b16 %v407
      %v952 = vunpack.c.h.b16 %v407
      %v953 = vunpack.c.l.b16 %v408
      %v954 = vunpack.c.h.b16 %v408
      %v955 = vunpack.c.l.b16 %v409
      %v956 = vunpack.c.h.b16 %v409
      %v957 = vunpack.c.l.b16 %v410
      %v958 = vunpack.c.h.b16 %v410
      %v959 = vunpack.c.l.b16 %v411
      %v960 = vunpack.c.h.b16 %v411
      %v961 = vunpack.c.l.b16 %v412
      %v962 = vunpack.c.h.b16 %v412
      %v963 = vunpack.c.l.b16 %v413
      %v964 = vunpack.c.h.b16 %v413
      %v965 = vunpack.c.l.b16 %v414
      %v966 = vunpack.c.h.b16 %v414
      %v967 = vunpack.c.l.b16 %v415
      %v968 = vunpack.c.h.b16 %v415
      %v969 = vunpack.c.l.b16 %v416
      %v970 = vunpack.c.h.b16 %v416
      %v971 = vunpack.c.l.b16 %v417
      %v972 = vunpack.c.h.b16 %v417
      %v973 = vunpack.c.l.b16 %v418
      %v974 = vunpack.c.h.b16 %v418
      %v975 = vunpack.c.l.b16 %v419
      %v976 = vunpack.c.h.b16 %v419
      %v977 = vunpack.c.l.b16 %v420
      %v978 = vunpack.c.h.b16 %v420
      %v979 = vunpack.c.l.b16 %v421
      %v980 = vunpack.c.h.b16 %v421
      %v981 = vunpack.c.l.b16 %v422
      %v982 = vunpack.c.h.b16 %v422
      %v983 = vunpack.c.l.b16 %v423
      %v984 = vunpack.c.h.b16 %v423
      %v985 = vunpack.c.l.b16 %v424
      %v986 = vunpack.c.h.b16 %v424
      %v987 = vunpack.c.l.b16 %v425
      %v988 = vunpack.c.h.b16 %v425
      %v989 = vunpack.c.l.b16 %v426
      %v990 = vunpack.c.h.b16 %v426
      %v991 = vunpack.c.l.b16 %v427
      %v992 = vunpack.c.h.b16 %v427
      %v993 = vunpack.c.l.b16 %v428
      %v994 = vunpack.c.h.b16 %v428
      %v995 = vunpack.c.l.b16 %v429
      %v996 = vunpack.c.h.b16 %v429
      %v997 = vunpack.c.l.b16 %v430
      %v998 = vunpack.c.h.b16 %v430
      %v999 = vunpack.c.l.b16 %v431
      %v1000 = vunpack.c.h.b16 %v431
      %v1001 = vunpack.c.l.b16 %v432
      %v1002 = vunpack.c.h.b16 %v432
      %v1003 = vunpack.c.l.b16 %v433
      %v1004 = vunpack.c.h.b16 %v433
      %v1005 = vunpack.c.l.b16 %v434
      %v1006 = vunpack.c.h.b16 %v434
      %v1007 = vunpack.c.l.b16 %v435
      %v1008 = vunpack.c.h.b16 %v435
      %v1009 = vunpack.c.l.b16 %v436
      %v1010 = vunpack.c.h.b16 %v436
      %v1011 = vunpack.c.l.b16 %v437
      %v1012 = vunpack.c.h.b16 %v437
      %v1013 = vunpack.c.l.b16 %v438
      %v1014 = vunpack.c.h.b16 %v438
      %v1015 = vunpack.c.l.b16 %v439
      %v1016 = vunpack.c.h.b16 %v439
      %v1017 = vunpack.c.l.b16 %v440
      %v1018 = vunpack.c.h.b16 %v440
      %v1019 = vunpack.c.l.b16 %v441
      %v1020 = vunpack.c.h.b16 %v441
      %v1021 = vunpack.c.l.b16 %v442
      %v1022 = vunpack.c.h.b16 %v442
      %v1023 = vunpack.c.l.b16 %v443
      %v1024 = vunpack.c.h.b16 %v443
      %v1025 = vunpack.c.l.b16 %v444
      %v1026 = vunpack.c.h.b16 %v444
      %v1027 = vunpack.c.l.b16 %v445
      %v1028 = vunpack.c.h.b16 %v445
      %v1029 = vunpack.c.l.b16 %v446
      %v1030 = vunpack.c.h.b16 %v446
      %v1031 = vunpack.c.l.b16 %v447
      %v1032 = vunpack.c.h.b16 %v447
      %v1033 = vunpack.c.l.b16 %v448
      %v1034 = vunpack.c.h.b16 %v448
      %v1035 = vpack.c.b16 %v841, %v839
      %v1036 = vpack.c.b16 %v842, %v840
      %v1037 = vpack.c.b16 %v845, %v843
      %v1038 = vpack.c.b16 %v846, %v844
      %v1039 = vpack.c.b16 %v849, %v847
      %v1040 = vpack.c.b16 %v850, %v848
      %v1041 = vpack.c.b16 %v853, %v851
      %v1042 = vpack.c.b16 %v854, %v852
      %v1043 = vpack.c.b16 %v857, %v855
      %v1044 = vpack.c.b16 %v858, %v856
      %v1045 = vpack.c.b16 %v861, %v859
      %v1046 = vpack.c.b16 %v862, %v860
      %v1047 = vpack.c.b16 %v865, %v863
      %v1048 = vpack.c.b16 %v866, %v864
      %v1049 = vpack.c.b16 %v869, %v867
      %v1050 = vpack.c.b16 %v870, %v868
      %v1051 = vpack.c.b16 %v873, %v871
      %v1052 = vpack.c.b16 %v874, %v872
      %v1053 = vpack.c.b16 %v877, %v875
      %v1054 = vpack.c.b16 %v878, %v876
      %v1055 = vpack.c.b16 %v881, %v879
      %v1056 = vpack.c.b16 %v882, %v880
      %v1057 = vpack.c.b16 %v885, %v883
      %v1058 = vpack.c.b16 %v886, %v884
      %v1059 = vpack.c.b16 %v889, %v887
      %v1060 = vpack.c.b16 %v890, %v888
      %v1061 = vpack.c.b16 %v893, %v891
      %v1062 = vpack.c.b16 %v894, %v892
      %v1063 = vpack.c.b16 %v897, %v895
      %v1064 = vpack.c.b16 %v898, %v896
      %v1065 = vpack.c.b16 %v901, %v899
      %v1066 = vpack.c.b16 %v902, %v900
      %v1067 = vpack.c.b16 %v905, %v903
      %v1068 = vpack.c.b16 %v906, %v904
      %v1069 = vpack.c.b16 %v909, %v907
      %v1070 = vpack.c.b16 %v910, %v908
      %v1071 = vpack.c.b16 %v913, %v911
      %v1072 = vpack.c.b16 %v914, %v912
      %v1073 = vpack.c.b16 %v917, %v915
      %v1074 = vpack.c.b16 %v918, %v916
      %v1075 = vpack.c.b16 %v921, %v919
      %v1076 = vpack.c.b16 %v922, %v920
      %v1077 = vpack.c.b16 %v925, %v923
      %v1078 = vpack.c.b16 %v926, %v924
      %v1079 = vpack.c.b16 %v929, %v927
      %v1080 = vpack.c.b16 %v930, %v928
      %v1081 = vpack.c.b16 %v933, %v931
      %v1082 = vpack.c.b16 %v934, %v932
      %v1083 = vpack.c.b16 %v937, %v935
      %v1084 = vpack.c.b16 %v938, %v936
      %v1085 = vpack.c.b16 %v941, %v939
      %v1086 = vpack.c.b16 %v942, %v940
      %v1087 = vpack.c.b16 %v945, %v943
      %v1088 = vpack.c.b16 %v946, %v944
      %v1089 = vpack.c.b16 %v949, %v947
      %v1090 = vpack.c.b16 %v950, %v948
      %v1091 = vpack.c.b16 %v953, %v951
      %v1092 = vpack.c.b16 %v954, %v952
      %v1093 = vpack.c.b16 %v957, %v955
      %v1094 = vpack.c.b16 %v958, %v956
      %v1095 = vpack.c.b16 %v961, %v959
      %v1096 = vpack.c.b16 %v962, %v960
      %v1097 = vpack.c.b16 %v965, %v963
      %v1098 = vpack.c.b16 %v966, %v964
      %v1099 = vpack.c.b16 %v969, %v967
      %v1100 = vpack.c.b16 %v970, %v968
      %v1101 = vpack.c.b16 %v973, %v971
      %v1102 = vpack.c.b16 %v974, %v972
      %v1103 = vpack.c.b16 %v977, %v975
      %v1104 = vpack.c.b16 %v978, %v976
      %v1105 = vpack.c.b16 %v981, %v979
      %v1106 = vpack.c.b16 %v982, %v980
      %v1107 = vpack.c.b16 %v985, %v983
      %v1108 = vpack.c.b16 %v986, %v984
      %v1109 = vpack.c.b16 %v989, %v987
      %v1110 = vpack.c.b16 %v990, %v988
      %v1111 = vpack.c.b16 %v993, %v991
      %v1112 = vpack.c.b16 %v994, %v992
      %v1113 = vpack.c.b16 %v997, %v995
      %v1114 = vpack.c.b16 %v998, %v996
      %v1115 = vpack.c.b16 %v1001, %v999
      %v1116 = vpack.c.b16 %v1002, %v1000
      %v1117 = vpack.c.b16 %v1005, %v1003
      %v1118 = vpack.c.b16 %v1006, %v1004
      %v1119 = vpack.c.b16 %v1009, %v1007
      %v1120 = vpack.c.b16 %v1010, %v1008
      %v1121 = vpack.c.b16 %v1013, %v1011
      %v1122 = vpack.c.b16 %v1014, %v1012
      %v1123 = vpack.c.b16 %v1017, %v1015
      %v1124 = vpack.c.b16 %v1018, %v1016
      %v1125 = vpack.c.b16 %v1021, %v1019
      %v1126 = vpack.c.b16 %v1022, %v1020
      %v1127 = vpack.c.b16 %v1025, %v1023
      %v1128 = vpack.c.b16 %v1026, %v1024
      %v1129 = vpack.c.b16 %v1029, %v1027
      %v1130 = vpack.c.b16 %v1030, %v1028
      %v1131 = vpack.c.b16 %v1033, %v1031
      %v1132 = vpack.c.b16 %v1034, %v1032
      %vm1231 = vcmask 130048
      %v1233 = vsel %vm1231, %v643, 0
      %v1236 = vsel %vm1231, %v650, 0
      %v1239 = vsel %vm1231, %v657, 0
      %v1242 = vsel %vm1231, %v664, 0
      %v1245 = vsel %vm1231, %v671, 0
      %v1248 = vsel %vm1231, %v678, 0
      %v1251 = vsel %vm1231, %v685, 0
      %v1254 = vsel %vm1231, %v692, 0
      %1256 = vmatprep.subr.bf16.mxu0 %v1050
      %1257 = vmatpush1.bf16.msra.mxu0 %v1049
      %1258 = vmatprep.subr.bf16.mxu0 %v1048
      %1259 = vmatpush1.bf16.msra.mxu0 %v1047
      %1260 = vmatprep.subr.bf16.mxu0 %v1046
      %1261 = vmatpush1.bf16.msra.mxu0 %v1045
      %1262 = vmatprep.subr.bf16.mxu0 %v1044
      %1263 = vmatpush1.bf16.msra.mxu0 %v1043
      %1264 = vmatprep.subr.bf16.mxu0 %v1042
      %1265 = vmatpush1.bf16.msra.mxu0 %v1041
      %1266 = vmatprep.subr.bf16.mxu0 %v1040
      %1267 = vmatpush1.bf16.msra.mxu0 %v1039
      %1268 = vmatprep.subr.bf16.mxu0 %v1038
      %1269 = vmatpush1.bf16.msra.mxu0 %v1037
      %1270 = vmatprep.subr.bf16.mxu0 %v1036
      %1271 = vmatpush1.bf16.msra.mxu0 %v1035
      %1272 = vmatprep.subr.bf16.mxu0 %v1066
      %1273 = vmatpush2.bf16.msra.mxu0 %v1065
      %1274 = vmatprep.subr.bf16.mxu0 %v1064
      %1275 = vmatpush2.bf16.msra.mxu0 %v1063
      %1276 = vmatprep.subr.bf16.mxu0 %v1062
      %1277 = vmatpush2.bf16.msra.mxu0 %v1061
      %1278 = vmatprep.subr.bf16.mxu0 %v1060
      %1279 = vmatpush2.bf16.msra.mxu0 %v1059
      %1280 = vmatprep.subr.bf16.mxu0 %v1058
      %1281 = vmatpush2.bf16.msra.mxu0 %v1057
      %1282 = vmatprep.subr.bf16.mxu0 %v1056
      %1283 = vmatpush2.bf16.msra.mxu0 %v1055
      %1284 = vmatprep.subr.bf16.mxu0 %v1054
      %1285 = vmatpush2.bf16.msra.mxu0 %v1053
      %1286 = vmatprep.subr.bf16.mxu0 %v1052
      %1287 = vmatpush2.bf16.msra.mxu0 %v1051
      %1288 = vmatprep.mubr.bf16.mxu0 %v638
      %1289 = vmatmul.mubr.bf16.gmra.mxu0 %v637
      %v1290 = vpop.f32.mrf.mxu0
      %v1291 = vadd.f32 %v454, %v1290
      %v1292 = vpop.f32.mrf.mxu0
      %v1293 = vadd.f32 %v458, %v1292
      %v1294 = vpop.f32.mrf.mxu0
      %v1295 = vadd.f32 %v454, %v1294
      %v1296 = vpop.f32.mrf.mxu0
      %v1297 = vadd.f32 %v458, %v1296
      %1298 = vmatprep.mubr.bf16.mxu0 %v645
      %1299 = vmatmul.mubr.bf16.gmra.mxu0 %v644
      %v1300 = vpop.f32.mrf.mxu0
      %v1301 = vadd.f32 %v454, %v1300
      %v1302 = vpop.f32.mrf.mxu0
      %v1303 = vadd.f32 %v458, %v1302
      %v1304 = vpop.f32.mrf.mxu0
      %v1305 = vadd.f32 %v454, %v1304
      %v1306 = vpop.f32.mrf.mxu0
      %v1307 = vadd.f32 %v458, %v1306
      %1308 = vmatprep.mubr.bf16.mxu0 %v652
      %1309 = vmatmul.mubr.bf16.gmra.mxu0 %v651
      %v1310 = vpop.f32.mrf.mxu0
      %v1311 = vadd.f32 %v454, %v1310
      %v1312 = vpop.f32.mrf.mxu0
      %v1313 = vadd.f32 %v458, %v1312
      %v1314 = vpop.f32.mrf.mxu0
      %v1315 = vadd.f32 %v454, %v1314
      %v1316 = vpop.f32.mrf.mxu0
      %v1317 = vadd.f32 %v458, %v1316
      %1318 = vmatprep.mubr.bf16.mxu0 %v659
      %1319 = vmatmul.mubr.bf16.gmra.mxu0 %v658
      %v1320 = vpop.f32.mrf.mxu0
      %v1321 = vadd.f32 %v454, %v1320
      %v1322 = vpop.f32.mrf.mxu0
      %v1323 = vadd.f32 %v458, %v1322
      %v1324 = vpop.f32.mrf.mxu0
      %v1325 = vadd.f32 %v454, %v1324
      %v1326 = vpop.f32.mrf.mxu0
      %v1327 = vadd.f32 %v458, %v1326
      %1328 = vmatprep.mubr.bf16.mxu0 %v666
      %1329 = vmatmul.mubr.bf16.gmra.mxu0 %v665
      %v1330 = vpop.f32.mrf.mxu0
      %v1331 = vadd.f32 %v454, %v1330
      %v1332 = vpop.f32.mrf.mxu0
      %v1333 = vadd.f32 %v458, %v1332
      %v1334 = vpop.f32.mrf.mxu0
      %v1335 = vadd.f32 %v454, %v1334
      %v1336 = vpop.f32.mrf.mxu0
      %v1337 = vadd.f32 %v458, %v1336
      %1338 = vmatprep.mubr.bf16.mxu0 %v673
      %1339 = vmatmul.mubr.bf16.gmra.mxu0 %v672
      %v1340 = vpop.f32.mrf.mxu0
      %v1341 = vadd.f32 %v454, %v1340
      %v1342 = vpop.f32.mrf.mxu0
      %v1343 = vadd.f32 %v458, %v1342
      %v1344 = vpop.f32.mrf.mxu0
      %v1345 = vadd.f32 %v454, %v1344
      %v1346 = vpop.f32.mrf.mxu0
      %v1347 = vadd.f32 %v458, %v1346
      %1348 = vmatprep.mubr.bf16.mxu0 %v680
      %1349 = vmatmul.mubr.bf16.gmra.mxu0 %v679
      %v1350 = vpop.f32.mrf.mxu0
      %v1351 = vadd.f32 %v454, %v1350
      %v1352 = vpop.f32.mrf.mxu0
      %v1353 = vadd.f32 %v458, %v1352
      %v1354 = vpop.f32.mrf.mxu0
      %v1355 = vadd.f32 %v454, %v1354
      %v1356 = vpop.f32.mrf.mxu0
      %v1357 = vadd.f32 %v458, %v1356
      %1358 = vmatprep.mubr.bf16.mxu0 %v687
      %1359 = vmatmul.mubr.bf16.gmra.mxu0 %v686
      %v1360 = vpop.f32.mrf.mxu0
      %v1361 = vadd.f32 %v454, %v1360
      %v1362 = vpop.f32.mrf.mxu0
      %v1363 = vadd.f32 %v458, %v1362
      %v1364 = vpop.f32.mrf.mxu0
      %v1365 = vadd.f32 %v454, %v1364
      %v1366 = vpop.f32.mrf.mxu0
      %v1367 = vadd.f32 %v458, %v1366
      %1368 = vdwg.mxu0
      %1369 = vmatprep.subr.bf16.mxu0 %v1082
      %1370 = vmatpush1.bf16.msra.mxu0 %v1081
      %1371 = vmatprep.subr.bf16.mxu0 %v1080
      %1372 = vmatpush1.bf16.msra.mxu0 %v1079
      %1373 = vmatprep.subr.bf16.mxu0 %v1078
      %1374 = vmatpush1.bf16.msra.mxu0 %v1077
      %1375 = vmatprep.subr.bf16.mxu0 %v1076
      %1376 = vmatpush1.bf16.msra.mxu0 %v1075
      %1377 = vmatprep.subr.bf16.mxu0 %v1074
      %1378 = vmatpush1.bf16.msra.mxu0 %v1073
      %1379 = vmatprep.subr.bf16.mxu0 %v1072
      %1380 = vmatpush1.bf16.msra.mxu0 %v1071
      %1381 = vmatprep.subr.bf16.mxu0 %v1070
      %1382 = vmatpush1.bf16.msra.mxu0 %v1069
      %1383 = vmatprep.subr.bf16.mxu0 %v1068
      %1384 = vmatpush1.bf16.msra.mxu0 %v1067
      %1385 = vmatprep.subr.bf16.mxu0 %v1098
      %1386 = vmatpush2.bf16.msra.mxu0 %v1097
      %1387 = vmatprep.subr.bf16.mxu0 %v1096
      %1388 = vmatpush2.bf16.msra.mxu0 %v1095
      %1389 = vmatprep.subr.bf16.mxu0 %v1094
      %1390 = vmatpush2.bf16.msra.mxu0 %v1093
      %1391 = vmatprep.subr.bf16.mxu0 %v1092
      %1392 = vmatpush2.bf16.msra.mxu0 %v1091
      %1393 = vmatprep.subr.bf16.mxu0 %v1090
      %1394 = vmatpush2.bf16.msra.mxu0 %v1089
      %1395 = vmatprep.subr.bf16.mxu0 %v1088
      %1396 = vmatpush2.bf16.msra.mxu0 %v1087
      %1397 = vmatprep.subr.bf16.mxu0 %v1086
      %1398 = vmatpush2.bf16.msra.mxu0 %v1085
      %1399 = vmatprep.subr.bf16.mxu0 %v1084
      %1400 = vmatpush2.bf16.msra.mxu0 %v1083
      %1401 = vmatprep.mubr.bf16.mxu0 %v640
      %1402 = vmatmul.mubr.bf16.gmra.mxu0 %v639
      %v1403 = vpop.f32.mrf.mxu0
      %v1404 = vadd.f32 %v1291, %v1403
      %v1405 = vpop.f32.mrf.mxu0
      %v1406 = vadd.f32 %v1293, %v1405
      %v1407 = vpop.f32.mrf.mxu0
      %v1408 = vadd.f32 %v1295, %v1407
      %v1409 = vpop.f32.mrf.mxu0
      %v1410 = vadd.f32 %v1297, %v1409
      %1411 = vmatprep.mubr.bf16.mxu0 %v647
      %1412 = vmatmul.mubr.bf16.gmra.mxu0 %v646
      %v1413 = vpop.f32.mrf.mxu0
      %v1414 = vadd.f32 %v1301, %v1413
      %v1415 = vpop.f32.mrf.mxu0
      %v1416 = vadd.f32 %v1303, %v1415
      %v1417 = vpop.f32.mrf.mxu0
      %v1418 = vadd.f32 %v1305, %v1417
      %v1419 = vpop.f32.mrf.mxu0
      %v1420 = vadd.f32 %v1307, %v1419
      %1421 = vmatprep.mubr.bf16.mxu0 %v654
      %1422 = vmatmul.mubr.bf16.gmra.mxu0 %v653
      %v1423 = vpop.f32.mrf.mxu0
      %v1424 = vadd.f32 %v1311, %v1423
      %v1425 = vpop.f32.mrf.mxu0
      %v1426 = vadd.f32 %v1313, %v1425
      %v1427 = vpop.f32.mrf.mxu0
      %v1428 = vadd.f32 %v1315, %v1427
      %v1429 = vpop.f32.mrf.mxu0
      %v1430 = vadd.f32 %v1317, %v1429
      %1431 = vmatprep.mubr.bf16.mxu0 %v661
      %1432 = vmatmul.mubr.bf16.gmra.mxu0 %v660
      %v1433 = vpop.f32.mrf.mxu0
      %v1434 = vadd.f32 %v1321, %v1433
      %v1435 = vpop.f32.mrf.mxu0
      %v1436 = vadd.f32 %v1323, %v1435
      %v1437 = vpop.f32.mrf.mxu0
      %v1438 = vadd.f32 %v1325, %v1437
      %v1439 = vpop.f32.mrf.mxu0
      %v1440 = vadd.f32 %v1327, %v1439
      %1441 = vmatprep.mubr.bf16.mxu0 %v668
      %1442 = vmatmul.mubr.bf16.gmra.mxu0 %v667
      %v1443 = vpop.f32.mrf.mxu0
      %v1444 = vadd.f32 %v1331, %v1443
      %v1445 = vpop.f32.mrf.mxu0
      %v1446 = vadd.f32 %v1333, %v1445
      %v1447 = vpop.f32.mrf.mxu0
      %v1448 = vadd.f32 %v1335, %v1447
      %v1449 = vpop.f32.mrf.mxu0
      %v1450 = vadd.f32 %v1337, %v1449
      %1451 = vmatprep.mubr.bf16.mxu0 %v675
      %1452 = vmatmul.mubr.bf16.gmra.mxu0 %v674
      %v1453 = vpop.f32.mrf.mxu0
      %v1454 = vadd.f32 %v1341, %v1453
      %v1455 = vpop.f32.mrf.mxu0
      %v1456 = vadd.f32 %v1343, %v1455
      %v1457 = vpop.f32.mrf.mxu0
      %v1458 = vadd.f32 %v1345, %v1457
      %v1459 = vpop.f32.mrf.mxu0
      %v1460 = vadd.f32 %v1347, %v1459
      %1461 = vmatprep.mubr.bf16.mxu0 %v682
      %1462 = vmatmul.mubr.bf16.gmra.mxu0 %v681
      %v1463 = vpop.f32.mrf.mxu0
      %v1464 = vadd.f32 %v1351, %v1463
      %v1465 = vpop.f32.mrf.mxu0
      %v1466 = vadd.f32 %v1353, %v1465
      %v1467 = vpop.f32.mrf.mxu0
      %v1468 = vadd.f32 %v1355, %v1467
      %v1469 = vpop.f32.mrf.mxu0
      %v1470 = vadd.f32 %v1357, %v1469
      %1471 = vmatprep.mubr.bf16.mxu0 %v689
      %1472 = vmatmul.mubr.bf16.gmra.mxu0 %v688
      %v1473 = vpop.f32.mrf.mxu0
      %v1474 = vadd.f32 %v1361, %v1473
      %v1475 = vpop.f32.mrf.mxu0
      %v1476 = vadd.f32 %v1363, %v1475
      %v1477 = vpop.f32.mrf.mxu0
      %v1478 = vadd.f32 %v1365, %v1477
      %v1479 = vpop.f32.mrf.mxu0
      %v1480 = vadd.f32 %v1367, %v1479
      %1481 = vdwg.mxu0
      %1482 = vmatprep.subr.bf16.mxu0 %v1114
      %1483 = vmatpush1.bf16.msra.mxu0 %v1113
      %1484 = vmatprep.subr.bf16.mxu0 %v1112
      %1485 = vmatpush1.bf16.msra.mxu0 %v1111
      %1486 = vmatprep.subr.bf16.mxu0 %v1110
      %1487 = vmatpush1.bf16.msra.mxu0 %v1109
      %1488 = vmatprep.subr.bf16.mxu0 %v1108
      %1489 = vmatpush1.bf16.msra.mxu0 %v1107
      %1490 = vmatprep.subr.bf16.mxu0 %v1106
      %1491 = vmatpush1.bf16.msra.mxu0 %v1105
      %1492 = vmatprep.subr.bf16.mxu0 %v1104
      %1493 = vmatpush1.bf16.msra.mxu0 %v1103
      %1494 = vmatprep.subr.bf16.mxu0 %v1102
      %1495 = vmatpush1.bf16.msra.mxu0 %v1101
      %1496 = vmatprep.subr.bf16.mxu0 %v1100
      %1497 = vmatpush1.bf16.msra.mxu0 %v1099
      %1498 = vmatprep.subr.bf16.mxu0 %v1130
      %1499 = vmatpush2.bf16.msra.mxu0 %v1129
      %1500 = vmatprep.subr.bf16.mxu0 %v1128
      %1501 = vmatpush2.bf16.msra.mxu0 %v1127
      %1502 = vmatprep.subr.bf16.mxu0 %v1126
      %1503 = vmatpush2.bf16.msra.mxu0 %v1125
      %1504 = vmatprep.subr.bf16.mxu0 %v1124
      %1505 = vmatpush2.bf16.msra.mxu0 %v1123
      %1506 = vmatprep.subr.bf16.mxu0 %v1122
      %1507 = vmatpush2.bf16.msra.mxu0 %v1121
      %1508 = vmatprep.subr.bf16.mxu0 %v1120
      %1509 = vmatpush2.bf16.msra.mxu0 %v1119
      %1510 = vmatprep.subr.bf16.mxu0 %v1118
      %1511 = vmatpush2.bf16.msra.mxu0 %v1117
      %1512 = vmatprep.subr.bf16.mxu0 %v1116
      %1513 = vmatpush2.bf16.msra.mxu0 %v1115
      %1514 = vmatprep.mubr.bf16.mxu0 %v642
      %1515 = vmatmul.mubr.bf16.gmra.mxu0 %v641
      %v1516 = vpop.f32.mrf.mxu0
      %v1517 = vadd.f32 %v1404, %v1516
      %v1518 = vpop.f32.mrf.mxu0
      %v1519 = vadd.f32 %v1406, %v1518
      %v1520 = vpop.f32.mrf.mxu0
      %v1521 = vadd.f32 %v1408, %v1520
      %v1522 = vpop.f32.mrf.mxu0
      %v1523 = vadd.f32 %v1410, %v1522
      %1524 = vmatprep.mubr.bf16.mxu0 %v649
      %1525 = vmatmul.mubr.bf16.gmra.mxu0 %v648
      %v1526 = vpop.f32.mrf.mxu0
      %v1527 = vadd.f32 %v1414, %v1526
      %v1528 = vpop.f32.mrf.mxu0
      %v1529 = vadd.f32 %v1416, %v1528
      %v1530 = vpop.f32.mrf.mxu0
      %v1531 = vadd.f32 %v1418, %v1530
      %v1532 = vpop.f32.mrf.mxu0
      %v1533 = vadd.f32 %v1420, %v1532
      %1534 = vmatprep.mubr.bf16.mxu0 %v656
      %1535 = vmatmul.mubr.bf16.gmra.mxu0 %v655
      %v1536 = vpop.f32.mrf.mxu0
      %v1537 = vadd.f32 %v1424, %v1536
      %v1538 = vpop.f32.mrf.mxu0
      %v1539 = vadd.f32 %v1426, %v1538
      %v1540 = vpop.f32.mrf.mxu0
      %v1541 = vadd.f32 %v1428, %v1540
      %v1542 = vpop.f32.mrf.mxu0
      %v1543 = vadd.f32 %v1430, %v1542
      %1544 = vmatprep.mubr.bf16.mxu0 %v663
      %1545 = vmatmul.mubr.bf16.gmra.mxu0 %v662
      %v1546 = vpop.f32.mrf.mxu0
      %v1547 = vadd.f32 %v1434, %v1546
      %v1548 = vpop.f32.mrf.mxu0
      %v1549 = vadd.f32 %v1436, %v1548
      %v1550 = vpop.f32.mrf.mxu0
      %v1551 = vadd.f32 %v1438, %v1550
      %v1552 = vpop.f32.mrf.mxu0
      %v1553 = vadd.f32 %v1440, %v1552
      %1554 = vmatprep.mubr.bf16.mxu0 %v670
      %1555 = vmatmul.mubr.bf16.gmra.mxu0 %v669
      %v1556 = vpop.f32.mrf.mxu0
      %v1557 = vadd.f32 %v1444, %v1556
      %v1558 = vpop.f32.mrf.mxu0
      %v1559 = vadd.f32 %v1446, %v1558
      %v1560 = vpop.f32.mrf.mxu0
      %v1561 = vadd.f32 %v1448, %v1560
      %v1562 = vpop.f32.mrf.mxu0
      %v1563 = vadd.f32 %v1450, %v1562
      %1564 = vmatprep.mubr.bf16.mxu0 %v677
      %1565 = vmatmul.mubr.bf16.gmra.mxu0 %v676
      %v1566 = vpop.f32.mrf.mxu0
      %v1567 = vadd.f32 %v1454, %v1566
      %v1568 = vpop.f32.mrf.mxu0
      %v1569 = vadd.f32 %v1456, %v1568
      %v1570 = vpop.f32.mrf.mxu0
      %v1571 = vadd.f32 %v1458, %v1570
      %v1572 = vpop.f32.mrf.mxu0
      %v1573 = vadd.f32 %v1460, %v1572
      %1574 = vmatprep.mubr.bf16.mxu0 %v684
      %1575 = vmatmul.mubr.bf16.gmra.mxu0 %v683
      %v1576 = vpop.f32.mrf.mxu0
      %v1577 = vadd.f32 %v1464, %v1576
      %v1578 = vpop.f32.mrf.mxu0
      %v1579 = vadd.f32 %v1466, %v1578
      %v1580 = vpop.f32.mrf.mxu0
      %v1581 = vadd.f32 %v1468, %v1580
      %v1582 = vpop.f32.mrf.mxu0
      %v1583 = vadd.f32 %v1470, %v1582
      %1584 = vmatprep.mubr.bf16.mxu0 %v691
      %1585 = vmatmul.mubr.bf16.gmra.mxu0 %v690
      %v1586 = vpop.f32.mrf.mxu0
      %v1587 = vadd.f32 %v1474, %v1586
      %v1588 = vpop.f32.mrf.mxu0
      %v1589 = vadd.f32 %v1476, %v1588
      %v1590 = vpop.f32.mrf.mxu0
      %v1591 = vadd.f32 %v1478, %v1590
      %v1592 = vpop.f32.mrf.mxu0
      %v1593 = vadd.f32 %v1480, %v1592
      %1594 = vdwg.mxu0
      %1595 = vmatprep.subr.bf16.mxu0 0
      %1596 = vmatpush1.bf16.msra.mxu0 0
      %1597 = vmatprep.subr.bf16.mxu0 0
      %1598 = vmatpush1.bf16.msra.mxu0 0
      %1599 = vmatprep.subr.bf16.mxu0 0
      %1600 = vmatpush1.bf16.msra.mxu0 0
      %1601 = vmatprep.subr.bf16.mxu0 0
      %1602 = vmatpush1.bf16.msra.mxu0 0
      %1603 = vmatprep.subr.bf16.mxu0 0
      %1604 = vmatpush1.bf16.msra.mxu0 0
      %1605 = vmatprep.subr.bf16.mxu0 0
      %1606 = vmatpush1.bf16.msra.mxu0 0
      %1607 = vmatprep.subr.bf16.mxu0 0
      %1608 = vmatpush1.bf16.msra.mxu0 0
      %1609 = vmatprep.subr.bf16.mxu0 %v1132
      %1610 = vmatpush1.bf16.msra.mxu0 %v1131
      %1611 = vmatprep.subr.bf16.mxu0 0
      %1612 = vmatpush2.bf16.msra.mxu0 0
      %1613 = vmatprep.subr.bf16.mxu0 0
      %1614 = vmatpush2.bf16.msra.mxu0 0
      %1615 = vmatprep.subr.bf16.mxu0 0
      %1616 = vmatpush2.bf16.msra.mxu0 0
      %1617 = vmatprep.subr.bf16.mxu0 0
      %1618 = vmatpush2.bf16.msra.mxu0 0
      %1619 = vmatprep.subr.bf16.mxu0 0
      %1620 = vmatpush2.bf16.msra.mxu0 0
      %1621 = vmatprep.subr.bf16.mxu0 0
      %1622 = vmatpush2.bf16.msra.mxu0 0
      %1623 = vmatprep.subr.bf16.mxu0 0
      %1624 = vmatpush2.bf16.msra.mxu0 0
      %1625 = vmatprep.subr.bf16.mxu0 0
      %1626 = vmatpush2.bf16.msra.mxu0 0
      %1627 = vmatprep.mubr.bf16.mxu0 0
      %1628 = vmatmul.mubr.bf16.gmra.mxu0 %v1233
      %v1629 = vpop.f32.mrf.mxu0
      %v1630 = vadd.f32 %v1517, %v1629
      %v1631 = vpop.f32.mrf.mxu0
      %v1632 = vadd.f32 %v1519, %v1631
      %v1633 = vpop.f32.mrf.mxu0
      %v1634 = vadd.f32 %v1521, %v1633
      %v1635 = vpop.f32.mrf.mxu0
      %v1636 = vadd.f32 %v1523, %v1635
      %1637 = vmatprep.mubr.bf16.mxu0 0
      %1638 = vmatmul.mubr.bf16.gmra.mxu0 %v1236
      %v1639 = vpop.f32.mrf.mxu0
      %v1640 = vadd.f32 %v1527, %v1639
      %v1641 = vpop.f32.mrf.mxu0
      %v1642 = vadd.f32 %v1529, %v1641
      %v1643 = vpop.f32.mrf.mxu0
      %v1644 = vadd.f32 %v1531, %v1643
      %v1645 = vpop.f32.mrf.mxu0
      %v1646 = vadd.f32 %v1533, %v1645
      %1647 = vmatprep.mubr.bf16.mxu0 0
      %1648 = vmatmul.mubr.bf16.gmra.mxu0 %v1239
      %v1649 = vpop.f32.mrf.mxu0
      %v1650 = vadd.f32 %v1537, %v1649
      %v1651 = vpop.f32.mrf.mxu0
      %v1652 = vadd.f32 %v1539, %v1651
      %v1653 = vpop.f32.mrf.mxu0
      %v1654 = vadd.f32 %v1541, %v1653
      %v1655 = vpop.f32.mrf.mxu0
      %v1656 = vadd.f32 %v1543, %v1655
      %1657 = vmatprep.mubr.bf16.mxu0 0
      %1658 = vmatmul.mubr.bf16.gmra.mxu0 %v1242
      %v1659 = vpop.f32.mrf.mxu0
      %v1660 = vadd.f32 %v1547, %v1659
      %v1661 = vpop.f32.mrf.mxu0
      %v1662 = vadd.f32 %v1549, %v1661
      %v1663 = vpop.f32.mrf.mxu0
      %v1664 = vadd.f32 %v1551, %v1663
      %v1665 = vpop.f32.mrf.mxu0
      %v1666 = vadd.f32 %v1553, %v1665
      %1667 = vmatprep.mubr.bf16.mxu0 0
      %1668 = vmatmul.mubr.bf16.gmra.mxu0 %v1245
      %v1669 = vpop.f32.mrf.mxu0
      %v1670 = vadd.f32 %v1557, %v1669
      %v1671 = vpop.f32.mrf.mxu0
      %v1672 = vadd.f32 %v1559, %v1671
      %v1673 = vpop.f32.mrf.mxu0
      %v1674 = vadd.f32 %v1561, %v1673
      %v1675 = vpop.f32.mrf.mxu0
      %v1676 = vadd.f32 %v1563, %v1675
      %1677 = vmatprep.mubr.bf16.mxu0 0
      %1678 = vmatmul.mubr.bf16.gmra.mxu0 %v1248
      %v1679 = vpop.f32.mrf.mxu0
      %v1680 = vadd.f32 %v1567, %v1679
      %v1681 = vpop.f32.mrf.mxu0
      %v1682 = vadd.f32 %v1569, %v1681
      %v1683 = vpop.f32.mrf.mxu0
      %v1684 = vadd.f32 %v1571, %v1683
      %v1685 = vpop.f32.mrf.mxu0
      %v1686 = vadd.f32 %v1573, %v1685
      %1687 = vmatprep.mubr.bf16.mxu0 0
      %1688 = vmatmul.mubr.bf16.gmra.mxu0 %v1251
      %v1689 = vpop.f32.mrf.mxu0
      %v1690 = vadd.f32 %v1577, %v1689
      %v1691 = vpop.f32.mrf.mxu0
      %v1692 = vadd.f32 %v1579, %v1691
      %v1693 = vpop.f32.mrf.mxu0
      %v1694 = vadd.f32 %v1581, %v1693
      %v1695 = vpop.f32.mrf.mxu0
      %v1696 = vadd.f32 %v1583, %v1695
      %1697 = vmatprep.mubr.bf16.mxu0 0
      %1698 = vmatmul.mubr.bf16.gmra.mxu0 %v1254
      %v1699 = vpop.f32.mrf.mxu0
      %v1700 = vadd.f32 %v1587, %v1699
      %v1701 = vpop.f32.mrf.mxu0
      %v1702 = vadd.f32 %v1589, %v1701
      %v1703 = vpop.f32.mrf.mxu0
      %v1704 = vadd.f32 %v1591, %v1703
      %v1705 = vpop.f32.mrf.mxu0
      %v1706 = vadd.f32 %v1593, %v1705
      %1707 = vdwg.mxu0
      %vm1708 = vcmp.gt.f32.partialorder %v1630, 0.0
      %vm1709 = vcmp.gt.f32.partialorder %v1632, 0.0
      %vm1710 = vcmp.gt.f32.partialorder %v1634, 0.0
      %vm1711 = vcmp.gt.f32.partialorder %v1636, 0.0
      %vm1712 = vcmp.gt.f32.partialorder %v1640, 0.0
      %vm1713 = vcmp.gt.f32.partialorder %v1642, 0.0
      %vm1714 = vcmp.gt.f32.partialorder %v1644, 0.0
      %vm1715 = vcmp.gt.f32.partialorder %v1646, 0.0
      %vm1716 = vcmp.gt.f32.partialorder %v1650, 0.0
      %vm1717 = vcmp.gt.f32.partialorder %v1652, 0.0
      %vm1718 = vcmp.gt.f32.partialorder %v1654, 0.0
      %vm1719 = vcmp.gt.f32.partialorder %v1656, 0.0
      %vm1720 = vcmp.gt.f32.partialorder %v1660, 0.0
      %vm1721 = vcmp.gt.f32.partialorder %v1662, 0.0
      %vm1722 = vcmp.gt.f32.partialorder %v1664, 0.0
      %vm1723 = vcmp.gt.f32.partialorder %v1666, 0.0
      %vm1724 = vcmp.gt.f32.partialorder %v1670, 0.0
      %vm1725 = vcmp.gt.f32.partialorder %v1672, 0.0
      %vm1726 = vcmp.gt.f32.partialorder %v1674, 0.0
      %vm1727 = vcmp.gt.f32.partialorder %v1676, 0.0
      %vm1728 = vcmp.gt.f32.partialorder %v1680, 0.0
      %vm1729 = vcmp.gt.f32.partialorder %v1682, 0.0
      %vm1730 = vcmp.gt.f32.partialorder %v1684, 0.0
      %vm1731 = vcmp.gt.f32.partialorder %v1686, 0.0
      %vm1732 = vcmp.gt.f32.partialorder %v1690, 0.0
      %vm1733 = vcmp.gt.f32.partialorder %v1692, 0.0
      %vm1734 = vcmp.gt.f32.partialorder %v1694, 0.0
      %vm1735 = vcmp.gt.f32.partialorder %v1696, 0.0
      %vm1736 = vcmp.gt.f32.partialorder %v1700, 0.0
      %vm1737 = vcmp.gt.f32.partialorder %v1702, 0.0
      %vm1738 = vcmp.gt.f32.partialorder %v1704, 0.0
      %vm1739 = vcmp.gt.f32.partialorder %v1706, 0.0
      %v1740 = vmul.f32 %v1630, 0.2
      %v1741 = vmul.f32 %v1632, 0.2
      %v1742 = vmul.f32 %v1634, 0.2
      %v1743 = vmul.f32 %v1636, 0.2
      %v1744 = vmul.f32 %v1640, 0.2
      %v1745 = vmul.f32 %v1642, 0.2
      %v1746 = vmul.f32 %v1644, 0.2
      %v1747 = vmul.f32 %v1646, 0.2
      %v1748 = vmul.f32 %v1650, 0.2
      %v1749 = vmul.f32 %v1652, 0.2
      %v1750 = vmul.f32 %v1654, 0.2
      %v1751 = vmul.f32 %v1656, 0.2
      %v1752 = vmul.f32 %v1660, 0.2
      %v1753 = vmul.f32 %v1662, 0.2
      %v1754 = vmul.f32 %v1664, 0.2
      %v1755 = vmul.f32 %v1666, 0.2
      %v1756 = vmul.f32 %v1670, 0.2
      %v1757 = vmul.f32 %v1672, 0.2
      %v1758 = vmul.f32 %v1674, 0.2
      %v1759 = vmul.f32 %v1676, 0.2
      %v1760 = vmul.f32 %v1680, 0.2
      %v1761 = vmul.f32 %v1682, 0.2
      %v1762 = vmul.f32 %v1684, 0.2
      %v1763 = vmul.f32 %v1686, 0.2
      %v1764 = vmul.f32 %v1690, 0.2
      %v1765 = vmul.f32 %v1692, 0.2
      %v1766 = vmul.f32 %v1694, 0.2
      %v1767 = vmul.f32 %v1696, 0.2
      %v1768 = vmul.f32 %v1700, 0.2
      %v1769 = vmul.f32 %v1702, 0.2
      %v1770 = vmul.f32 %v1704, 0.2
      %v1771 = vmul.f32 %v1706, 0.2
      %v1772 = vsel %vm1708, %v1630, %v1740
      %v1773 = vsel %vm1709, %v1632, %v1741
      %v1774 = vsel %vm1710, %v1634, %v1742
      %v1775 = vsel %vm1711, %v1636, %v1743
      %v1776 = vsel %vm1712, %v1640, %v1744
      %v1777 = vsel %vm1713, %v1642, %v1745
      %v1778 = vsel %vm1714, %v1644, %v1746
      %v1779 = vsel %vm1715, %v1646, %v1747
      %v1780 = vsel %vm1716, %v1650, %v1748
      %v1781 = vsel %vm1717, %v1652, %v1749
      %v1782 = vsel %vm1718, %v1654, %v1750
      %v1783 = vsel %vm1719, %v1656, %v1751
      %v1784 = vsel %vm1720, %v1660, %v1752
      %v1785 = vsel %vm1721, %v1662, %v1753
      %v1786 = vsel %vm1722, %v1664, %v1754
      %v1787 = vsel %vm1723, %v1666, %v1755
      %v1788 = vsel %vm1724, %v1670, %v1756
      %v1789 = vsel %vm1725, %v1672, %v1757
      %v1790 = vsel %vm1726, %v1674, %v1758
      %v1791 = vsel %vm1727, %v1676, %v1759
      %v1792 = vsel %vm1728, %v1680, %v1760
      %v1793 = vsel %vm1729, %v1682, %v1761
      %v1794 = vsel %vm1730, %v1684, %v1762
      %v1795 = vsel %vm1731, %v1686, %v1763
      %v1796 = vsel %vm1732, %v1690, %v1764
      %v1797 = vsel %vm1733, %v1692, %v1765
      %v1798 = vsel %vm1734, %v1694, %v1766
      %v1799 = vsel %vm1735, %v1696, %v1767
      %v1800 = vsel %vm1736, %v1700, %v1768
      %v1801 = vsel %vm1737, %v1702, %v1769
      %v1802 = vsel %vm1738, %v1704, %v1770
      %v1803 = vsel %vm1739, %v1706, %v1771
      %v1804 = vpack.c.bf16 %v1774, %v1772
      %v1805 = vpack.c.bf16 %v1775, %v1773
      %v1806 = vpack.c.bf16 %v1778, %v1776
      %v1807 = vpack.c.bf16 %v1779, %v1777
      %v1808 = vpack.c.bf16 %v1782, %v1780
      %v1809 = vpack.c.bf16 %v1783, %v1781
      %v1810 = vpack.c.bf16 %v1786, %v1784
      %v1811 = vpack.c.bf16 %v1787, %v1785
      %v1812 = vpack.c.bf16 %v1790, %v1788
      %v1813 = vpack.c.bf16 %v1791, %v1789
      %v1814 = vpack.c.bf16 %v1794, %v1792
      %v1815 = vpack.c.bf16 %v1795, %v1793
      %v1816 = vpack.c.bf16 %v1798, %v1796
      %v1817 = vpack.c.bf16 %v1799, %v1797
      %v1818 = vpack.c.bf16 %v1802, %v1800
      %v1819 = vpack.c.bf16 %v1803, %v1801
      %v1820 = vld [vmem:[%s3] sm:$0xff]
      %v1821 = vld [vmem:[%s3 + $0x8] sm:$0xff]
      %v1822 = vld [vmem:[%s3 + $0x10] sm:$0xff]
      %v1823 = vld [vmem:[%s3 + $0x18] sm:$0xff]
      %v1824 = vld [vmem:[%s3 + $0x20] sm:$0xff]
      %v1825 = vld [vmem:[%s3 + $0x28] sm:$0xff]
      %v1826 = vld [vmem:[%s3 + $0x30] sm:$0xff]
      %v1827 = vld [vmem:[%s3 + $0x38] sm:$0xff]
      %v1828 = vld [vmem:[%s3 + $0x40] sm:$0xff]
      %v1829 = vld [vmem:[%s3 + $0x48] sm:$0xff]
      %v1830 = vld [vmem:[%s3 + $0x50] sm:$0xff]
      %v1831 = vld [vmem:[%s3 + $0x58] sm:$0xff]
      %v1832 = vld [vmem:[%s3 + $0x60] sm:$0xff]
      %v1833 = vld [vmem:[%s3 + $0x68] sm:$0xff]
      %v1834 = vld [vmem:[%s3 + $0x70] sm:$0xff]
      %v1835 = vld [vmem:[%s3 + $0x78] sm:$0xff]
      %v1836 = vld [vmem:[%s3 + $0x80] sm:$0xff]
      %v1837 = vld [vmem:[%s3 + $0x88] sm:$0xff]
      %v1838 = vld [vmem:[%s3 + $0x90] sm:$0xff]
      %v1839 = vld [vmem:[%s3 + $0x98] sm:$0xff]
      %v1840 = vld [vmem:[%s3 + $0xa0] sm:$0xff]
      %v1841 = vld [vmem:[%s3 + $0xa8] sm:$0xff]
      %v1842 = vld [vmem:[%s3 + $0xb0] sm:$0xff]
      %v1843 = vld [vmem:[%s3 + $0xb8] sm:$0xff]
      %v1844 = vld [vmem:[%s3 + $0xc0] sm:$0xff]
      %v1845 = vld [vmem:[%s3 + $0xc8] sm:$0xff]
      %v1846 = vld [vmem:[%s3 + $0xd0] sm:$0xff]
      %v1847 = vld [vmem:[%s3 + $0xd8] sm:$0xff]
      %v1848 = vld [vmem:[%s3 + $0xe0] sm:$0xff]
      %v1849 = vld [vmem:[%s3 + $0xe8] sm:$0xff]
      %v1850 = vld [vmem:[%s3 + $0xf0] sm:$0xff]
      %v1851 = vld [vmem:[%s3 + $0xf8] sm:$0xff]
      %v1852 = vld [vmem:[%s4] sm:$0x3]
      %v1854 = vlaneseq
      %v1855 = vshrl.u32 %v1854, 7
      %v1856 = vsub.s32 0, %v1855
      %v1857 = vrot.slane %v1852, %v1856
      %v1858 = vlaneseq
      %v1859 = vshrl.u32 %v1858, 7
      %v1860 = vsub.s32 1, %v1859
      %v1861 = vrot.slane %v1852, %v1860
      %v1896 = vunpack.c.l.b16 %v1820
      %v1897 = vunpack.c.h.b16 %v1820
      %v1898 = vunpack.c.l.b16 %v1821
      %v1899 = vunpack.c.h.b16 %v1821
      %v1900 = vunpack.c.l.b16 %v1822
      %v1901 = vunpack.c.h.b16 %v1822
      %v1902 = vunpack.c.l.b16 %v1823
      %v1903 = vunpack.c.h.b16 %v1823
      %v1904 = vunpack.c.l.b16 %v1824
      %v1905 = vunpack.c.h.b16 %v1824
      %v1906 = vunpack.c.l.b16 %v1825
      %v1907 = vunpack.c.h.b16 %v1825
      %v1908 = vunpack.c.l.b16 %v1826
      %v1909 = vunpack.c.h.b16 %v1826
      %v1910 = vunpack.c.l.b16 %v1827
      %v1911 = vunpack.c.h.b16 %v1827
      %v1912 = vunpack.c.l.b16 %v1828
      %v1913 = vunpack.c.h.b16 %v1828
      %v1914 = vunpack.c.l.b16 %v1829
      %v1915 = vunpack.c.h.b16 %v1829
      %v1916 = vunpack.c.l.b16 %v1830
      %v1917 = vunpack.c.h.b16 %v1830
      %v1918 = vunpack.c.l.b16 %v1831
      %v1919 = vunpack.c.h.b16 %v1831
      %v1920 = vunpack.c.l.b16 %v1832
      %v1921 = vunpack.c.h.b16 %v1832
      %v1922 = vunpack.c.l.b16 %v1833
      %v1923 = vunpack.c.h.b16 %v1833
      %v1924 = vunpack.c.l.b16 %v1834
      %v1925 = vunpack.c.h.b16 %v1834
      %v1926 = vunpack.c.l.b16 %v1835
      %v1927 = vunpack.c.h.b16 %v1835
      %v1928 = vunpack.c.l.b16 %v1836
      %v1929 = vunpack.c.h.b16 %v1836
      %v1930 = vunpack.c.l.b16 %v1837
      %v1931 = vunpack.c.h.b16 %v1837
      %v1932 = vunpack.c.l.b16 %v1838
      %v1933 = vunpack.c.h.b16 %v1838
      %v1934 = vunpack.c.l.b16 %v1839
      %v1935 = vunpack.c.h.b16 %v1839
      %v1936 = vunpack.c.l.b16 %v1840
      %v1937 = vunpack.c.h.b16 %v1840
      %v1938 = vunpack.c.l.b16 %v1841
      %v1939 = vunpack.c.h.b16 %v1841
      %v1940 = vunpack.c.l.b16 %v1842
      %v1941 = vunpack.c.h.b16 %v1842
      %v1942 = vunpack.c.l.b16 %v1843
      %v1943 = vunpack.c.h.b16 %v1843
      %v1944 = vunpack.c.l.b16 %v1844
      %v1945 = vunpack.c.h.b16 %v1844
      %v1946 = vunpack.c.l.b16 %v1845
      %v1947 = vunpack.c.h.b16 %v1845
      %v1948 = vunpack.c.l.b16 %v1846
      %v1949 = vunpack.c.h.b16 %v1846
      %v1950 = vunpack.c.l.b16 %v1847
      %v1951 = vunpack.c.h.b16 %v1847
      %v1952 = vunpack.c.l.b16 %v1848
      %v1953 = vunpack.c.h.b16 %v1848
      %v1954 = vunpack.c.l.b16 %v1849
      %v1955 = vunpack.c.h.b16 %v1849
      %v1956 = vunpack.c.l.b16 %v1850
      %v1957 = vunpack.c.h.b16 %v1850
      %v1958 = vunpack.c.l.b16 %v1851
      %v1959 = vunpack.c.h.b16 %v1851
      %v1960 = vpack.c.b16 %v1898, %v1896
      %v1961 = vpack.c.b16 %v1899, %v1897
      %v1962 = vpack.c.b16 %v1902, %v1900
      %v1963 = vpack.c.b16 %v1903, %v1901
      %v1964 = vpack.c.b16 %v1906, %v1904
      %v1965 = vpack.c.b16 %v1907, %v1905
      %v1966 = vpack.c.b16 %v1910, %v1908
      %v1967 = vpack.c.b16 %v1911, %v1909
      %v1968 = vpack.c.b16 %v1914, %v1912
      %v1969 = vpack.c.b16 %v1915, %v1913
      %v1970 = vpack.c.b16 %v1918, %v1916
      %v1971 = vpack.c.b16 %v1919, %v1917
      %v1972 = vpack.c.b16 %v1922, %v1920
      %v1973 = vpack.c.b16 %v1923, %v1921
      %v1974 = vpack.c.b16 %v1926, %v1924
      %v1975 = vpack.c.b16 %v1927, %v1925
      %v1976 = vpack.c.b16 %v1930, %v1928
      %v1977 = vpack.c.b16 %v1931, %v1929
      %v1978 = vpack.c.b16 %v1934, %v1932
      %v1979 = vpack.c.b16 %v1935, %v1933
      %v1980 = vpack.c.b16 %v1938, %v1936
      %v1981 = vpack.c.b16 %v1939, %v1937
      %v1982 = vpack.c.b16 %v1942, %v1940
      %v1983 = vpack.c.b16 %v1943, %v1941
      %v1984 = vpack.c.b16 %v1946, %v1944
      %v1985 = vpack.c.b16 %v1947, %v1945
      %v1986 = vpack.c.b16 %v1950, %v1948
      %v1987 = vpack.c.b16 %v1951, %v1949
      %v1988 = vpack.c.b16 %v1954, %v1952
      %v1989 = vpack.c.b16 %v1955, %v1953
      %v1990 = vpack.c.b16 %v1958, %v1956
      %v1991 = vpack.c.b16 %v1959, %v1957
      %2024 = vmatprep.subr.bf16.mxu0 %v1975
      %2025 = vmatpush1.bf16.msra.mxu0 %v1974
      %2026 = vmatprep.subr.bf16.mxu0 %v1973
      %2027 = vmatpush1.bf16.msra.mxu0 %v1972
      %2028 = vmatprep.subr.bf16.mxu0 %v1971
      %2029 = vmatpush1.bf16.msra.mxu0 %v1970
      %2030 = vmatprep.subr.bf16.mxu0 %v1969
      %2031 = vmatpush1.bf16.msra.mxu0 %v1968
      %2032 = vmatprep.subr.bf16.mxu0 %v1967
      %2033 = vmatpush1.bf16.msra.mxu0 %v1966
      %2034 = vmatprep.subr.bf16.mxu0 %v1965
      %2035 = vmatpush1.bf16.msra.mxu0 %v1964
      %2036 = vmatprep.subr.bf16.mxu0 %v1963
      %2037 = vmatpush1.bf16.msra.mxu0 %v1962
      %2038 = vmatprep.subr.bf16.mxu0 %v1961
      %2039 = vmatpush1.bf16.msra.mxu0 %v1960
      %2040 = vmatprep.subr.bf16.mxu0 %v1991
      %2041 = vmatpush2.bf16.msra.mxu0 %v1990
      %2042 = vmatprep.subr.bf16.mxu0 %v1989
      %2043 = vmatpush2.bf16.msra.mxu0 %v1988
      %2044 = vmatprep.subr.bf16.mxu0 %v1987
      %2045 = vmatpush2.bf16.msra.mxu0 %v1986
      %2046 = vmatprep.subr.bf16.mxu0 %v1985
      %2047 = vmatpush2.bf16.msra.mxu0 %v1984
      %2048 = vmatprep.subr.bf16.mxu0 %v1983
      %2049 = vmatpush2.bf16.msra.mxu0 %v1982
      %2050 = vmatprep.subr.bf16.mxu0 %v1981
      %2051 = vmatpush2.bf16.msra.mxu0 %v1980
      %2052 = vmatprep.subr.bf16.mxu0 %v1979
      %2053 = vmatpush2.bf16.msra.mxu0 %v1978
      %2054 = vmatprep.subr.bf16.mxu0 %v1977
      %2055 = vmatpush2.bf16.msra.mxu0 %v1976
      %2056 = vmatprep.mubr.bf16.mxu0 %v1805
      %2057 = vmatmul.mubr.bf16.gmra.mxu0 %v1804
      %v2058 = vpop.f32.mrf.mxu0
      %v2059 = vadd.f32 %v1857, %v2058
      %v2060 = vpop.f32.mrf.mxu0
      %v2061 = vadd.f32 %v1861, %v2060
      %v2062 = vpop.f32.mrf.mxu0
      %v2063 = vadd.f32 %v1857, %v2062
      %v2064 = vpop.f32.mrf.mxu0
      %v2065 = vadd.f32 %v1861, %v2064
      %2066 = vmatprep.mubr.bf16.mxu0 %v1807
      %2067 = vmatmul.mubr.bf16.gmra.mxu0 %v1806
      %v2068 = vpop.f32.mrf.mxu0
      %v2069 = vadd.f32 %v1857, %v2068
      %v2070 = vpop.f32.mrf.mxu0
      %v2071 = vadd.f32 %v1861, %v2070
      %v2072 = vpop.f32.mrf.mxu0
      %v2073 = vadd.f32 %v1857, %v2072
      %v2074 = vpop.f32.mrf.mxu0
      %v2075 = vadd.f32 %v1861, %v2074
      %2076 = vmatprep.mubr.bf16.mxu0 %v1809
      %2077 = vmatmul.mubr.bf16.gmra.mxu0 %v1808
      %v2078 = vpop.f32.mrf.mxu0
      %v2079 = vadd.f32 %v1857, %v2078
      %v2080 = vpop.f32.mrf.mxu0
      %v2081 = vadd.f32 %v1861, %v2080
      %v2082 = vpop.f32.mrf.mxu0
      %v2083 = vadd.f32 %v1857, %v2082
      %v2084 = vpop.f32.mrf.mxu0
      %v2085 = vadd.f32 %v1861, %v2084
      %2086 = vmatprep.mubr.bf16.mxu0 %v1811
      %2087 = vmatmul.mubr.bf16.gmra.mxu0 %v1810
      %v2088 = vpop.f32.mrf.mxu0
      %v2089 = vadd.f32 %v1857, %v2088
      %v2090 = vpop.f32.mrf.mxu0
      %v2091 = vadd.f32 %v1861, %v2090
      %v2092 = vpop.f32.mrf.mxu0
      %v2093 = vadd.f32 %v1857, %v2092
      %v2094 = vpop.f32.mrf.mxu0
      %v2095 = vadd.f32 %v1861, %v2094
      %2096 = vmatprep.mubr.bf16.mxu0 %v1813
      %2097 = vmatmul.mubr.bf16.gmra.mxu0 %v1812
      %v2098 = vpop.f32.mrf.mxu0
      %v2099 = vadd.f32 %v1857, %v2098
      %v2100 = vpop.f32.mrf.mxu0
      %v2101 = vadd.f32 %v1861, %v2100
      %v2102 = vpop.f32.mrf.mxu0
      %v2103 = vadd.f32 %v1857, %v2102
      %v2104 = vpop.f32.mrf.mxu0
      %v2105 = vadd.f32 %v1861, %v2104
      %2106 = vmatprep.mubr.bf16.mxu0 %v1815
      %2107 = vmatmul.mubr.bf16.gmra.mxu0 %v1814
      %v2108 = vpop.f32.mrf.mxu0
      %v2109 = vadd.f32 %v1857, %v2108
      %v2110 = vpop.f32.mrf.mxu0
      %v2111 = vadd.f32 %v1861, %v2110
      %v2112 = vpop.f32.mrf.mxu0
      %v2113 = vadd.f32 %v1857, %v2112
      %v2114 = vpop.f32.mrf.mxu0
      %v2115 = vadd.f32 %v1861, %v2114
      %2116 = vmatprep.mubr.bf16.mxu0 %v1817
      %2117 = vmatmul.mubr.bf16.gmra.mxu0 %v1816
      %v2118 = vpop.f32.mrf.mxu0
      %v2119 = vadd.f32 %v1857, %v2118
      %v2120 = vpop.f32.mrf.mxu0
      %v2121 = vadd.f32 %v1861, %v2120
      %v2122 = vpop.f32.mrf.mxu0
      %v2123 = vadd.f32 %v1857, %v2122
      %v2124 = vpop.f32.mrf.mxu0
      %v2125 = vadd.f32 %v1861, %v2124
      %2126 = vmatprep.mubr.bf16.mxu0 %v1819
      %2127 = vmatmul.mubr.bf16.gmra.mxu0 %v1818
      %v2128 = vpop.f32.mrf.mxu0
      %v2129 = vadd.f32 %v1857, %v2128
      %v2130 = vpop.f32.mrf.mxu0
      %v2131 = vadd.f32 %v1861, %v2130
      %v2132 = vpop.f32.mrf.mxu0
      %v2133 = vadd.f32 %v1857, %v2132
      %v2134 = vpop.f32.mrf.mxu0
      %v2135 = vadd.f32 %v1861, %v2134
      %2136 = vdwg.mxu0
      %vm2137 = vcmp.gt.f32.partialorder %v2059, 0.0
      %vm2138 = vcmp.gt.f32.partialorder %v2061, 0.0
      %vm2139 = vcmp.gt.f32.partialorder %v2063, 0.0
      %vm2140 = vcmp.gt.f32.partialorder %v2065, 0.0
      %vm2141 = vcmp.gt.f32.partialorder %v2069, 0.0
      %vm2142 = vcmp.gt.f32.partialorder %v2071, 0.0
      %vm2143 = vcmp.gt.f32.partialorder %v2073, 0.0
      %vm2144 = vcmp.gt.f32.partialorder %v2075, 0.0
      %vm2145 = vcmp.gt.f32.partialorder %v2079, 0.0
      %vm2146 = vcmp.gt.f32.partialorder %v2081, 0.0
      %vm2147 = vcmp.gt.f32.partialorder %v2083, 0.0
      %vm2148 = vcmp.gt.f32.partialorder %v2085, 0.0
      %vm2149 = vcmp.gt.f32.partialorder %v2089, 0.0
      %vm2150 = vcmp.gt.f32.partialorder %v2091, 0.0
      %vm2151 = vcmp.gt.f32.partialorder %v2093, 0.0
      %vm2152 = vcmp.gt.f32.partialorder %v2095, 0.0
      %vm2153 = vcmp.gt.f32.partialorder %v2099, 0.0
      %vm2154 = vcmp.gt.f32.partialorder %v2101, 0.0
      %vm2155 = vcmp.gt.f32.partialorder %v2103, 0.0
      %vm2156 = vcmp.gt.f32.partialorder %v2105, 0.0
      %vm2157 = vcmp.gt.f32.partialorder %v2109, 0.0
      %vm2158 = vcmp.gt.f32.partialorder %v2111, 0.0
      %vm2159 = vcmp.gt.f32.partialorder %v2113, 0.0
      %vm2160 = vcmp.gt.f32.partialorder %v2115, 0.0
      %vm2161 = vcmp.gt.f32.partialorder %v2119, 0.0
      %vm2162 = vcmp.gt.f32.partialorder %v2121, 0.0
      %vm2163 = vcmp.gt.f32.partialorder %v2123, 0.0
      %vm2164 = vcmp.gt.f32.partialorder %v2125, 0.0
      %vm2165 = vcmp.gt.f32.partialorder %v2129, 0.0
      %vm2166 = vcmp.gt.f32.partialorder %v2131, 0.0
      %vm2167 = vcmp.gt.f32.partialorder %v2133, 0.0
      %vm2168 = vcmp.gt.f32.partialorder %v2135, 0.0
      %v2169 = vmul.f32 %v2059, 0.2
      %v2170 = vmul.f32 %v2061, 0.2
      %v2171 = vmul.f32 %v2063, 0.2
      %v2172 = vmul.f32 %v2065, 0.2
      %v2173 = vmul.f32 %v2069, 0.2
      %v2174 = vmul.f32 %v2071, 0.2
      %v2175 = vmul.f32 %v2073, 0.2
      %v2176 = vmul.f32 %v2075, 0.2
      %v2177 = vmul.f32 %v2079, 0.2
      %v2178 = vmul.f32 %v2081, 0.2
      %v2179 = vmul.f32 %v2083, 0.2
      %v2180 = vmul.f32 %v2085, 0.2
      %v2181 = vmul.f32 %v2089, 0.2
      %v2182 = vmul.f32 %v2091, 0.2
      %v2183 = vmul.f32 %v2093, 0.2
      %v2184 = vmul.f32 %v2095, 0.2
      %v2185 = vmul.f32 %v2099, 0.2
      %v2186 = vmul.f32 %v2101, 0.2
      %v2187 = vmul.f32 %v2103, 0.2
      %v2188 = vmul.f32 %v2105, 0.2
      %v2189 = vmul.f32 %v2109, 0.2
      %v2190 = vmul.f32 %v2111, 0.2
      %v2191 = vmul.f32 %v2113, 0.2
      %v2192 = vmul.f32 %v2115, 0.2
      %v2193 = vmul.f32 %v2119, 0.2
      %v2194 = vmul.f32 %v2121, 0.2
      %v2195 = vmul.f32 %v2123, 0.2
      %v2196 = vmul.f32 %v2125, 0.2
      %v2197 = vmul.f32 %v2129, 0.2
      %v2198 = vmul.f32 %v2131, 0.2
      %v2199 = vmul.f32 %v2133, 0.2
      %v2200 = vmul.f32 %v2135, 0.2
      %v2201 = vsel %vm2137, %v2059, %v2169
      %v2202 = vsel %vm2138, %v2061, %v2170
      %v2203 = vsel %vm2139, %v2063, %v2171
      %v2204 = vsel %vm2140, %v2065, %v2172
      %v2205 = vsel %vm2141, %v2069, %v2173
      %v2206 = vsel %vm2142, %v2071, %v2174
      %v2207 = vsel %vm2143, %v2073, %v2175
      %v2208 = vsel %vm2144, %v2075, %v2176
      %v2209 = vsel %vm2145, %v2079, %v2177
      %v2210 = vsel %vm2146, %v2081, %v2178
      %v2211 = vsel %vm2147, %v2083, %v2179
      %v2212 = vsel %vm2148, %v2085, %v2180
      %v2213 = vsel %vm2149, %v2089, %v2181
      %v2214 = vsel %vm2150, %v2091, %v2182
      %v2215 = vsel %vm2151, %v2093, %v2183
      %v2216 = vsel %vm2152, %v2095, %v2184
      %v2217 = vsel %vm2153, %v2099, %v2185
      %v2218 = vsel %vm2154, %v2101, %v2186
      %v2219 = vsel %vm2155, %v2103, %v2187
      %v2220 = vsel %vm2156, %v2105, %v2188
      %v2221 = vsel %vm2157, %v2109, %v2189
      %v2222 = vsel %vm2158, %v2111, %v2190
      %v2223 = vsel %vm2159, %v2113, %v2191
      %v2224 = vsel %vm2160, %v2115, %v2192
      %v2225 = vsel %vm2161, %v2119, %v2193
      %v2226 = vsel %vm2162, %v2121, %v2194
      %v2227 = vsel %vm2163, %v2123, %v2195
      %v2228 = vsel %vm2164, %v2125, %v2196
      %v2229 = vsel %vm2165, %v2129, %v2197
      %v2230 = vsel %vm2166, %v2131, %v2198
      %v2231 = vsel %vm2167, %v2133, %v2199
      %v2232 = vsel %vm2168, %v2135, %v2200
      %v2233 = vld [vmem:[%s5] sm:$0x3]
      %v2234 = vunpack.c.l.bf16 %v2233
      %v2236 = vlaneseq
      %v2237 = vshrl.u32 %v2236, 7
      %v2238 = vsub.s32 0, %v2237
      %v2239 = vrot.slane %v2234, %v2238
      %v2240 = vlaneseq
      %v2241 = vshrl.u32 %v2240, 7
      %v2242 = vsub.s32 2, %v2241
      %v2243 = vrot.slane %v2234, %v2242
      %v2246 = vlaneseq
      %v2247 = vshrl.u32 %v2246, 7
      %v2248 = vsub.s32 0, %v2247
      %v2249 = vrot.slane %v2239, %v2248
      %v2250 = vlaneseq
      %v2251 = vshrl.u32 %v2250, 7
      %v2252 = vsub.s32 0, %v2251
      %v2253 = vrot.slane %v2243, %v2252
      %v2254 = vmul.f32 %v2201, %v2249
      %v2255 = vmul.f32 %v2202, %v2253
      %v2256 = vmul.f32 %v2203, %v2249
      %v2257 = vmul.f32 %v2204, %v2253
      %v2258 = vmul.f32 %v2205, %v2249
      %v2259 = vmul.f32 %v2206, %v2253
      %v2260 = vmul.f32 %v2207, %v2249
      %v2261 = vmul.f32 %v2208, %v2253
      %v2262 = vmul.f32 %v2209, %v2249
      %v2263 = vmul.f32 %v2210, %v2253
      %v2264 = vmul.f32 %v2211, %v2249
      %v2265 = vmul.f32 %v2212, %v2253
      %v2266 = vmul.f32 %v2213, %v2249
      %v2267 = vmul.f32 %v2214, %v2253
      %v2268 = vmul.f32 %v2215, %v2249
      %v2269 = vmul.f32 %v2216, %v2253
      %v2270 = vmul.f32 %v2217, %v2249
      %v2271 = vmul.f32 %v2218, %v2253
      %v2272 = vmul.f32 %v2219, %v2249
      %v2273 = vmul.f32 %v2220, %v2253
      %v2274 = vmul.f32 %v2221, %v2249
      %v2275 = vmul.f32 %v2222, %v2253
      %v2276 = vmul.f32 %v2223, %v2249
      %v2277 = vmul.f32 %v2224, %v2253
      %v2278 = vmul.f32 %v2225, %v2249
      %v2279 = vmul.f32 %v2226, %v2253
      %v2280 = vmul.f32 %v2227, %v2249
      %v2281 = vmul.f32 %v2228, %v2253
      %v2282 = vmul.f32 %v2229, %v2249
      %v2283 = vmul.f32 %v2230, %v2253
      %v2284 = vmul.f32 %v2231, %v2249
      %v2285 = vmul.f32 %v2232, %v2253
      %v2286 = vadd.f32 %v2254, %v2255
      %2287 = vadd.xlane.f32.xlu0 %v2286
      %v2288 = vpop.xlane.xlu0 %2287
      %v2289 = vadd.f32 %v2256, %v2257
      %2290 = vadd.xlane.f32.xlu0 %v2289
      %v2291 = vpop.xlane.xlu0 %2290
      %v2292 = vadd.f32 %v2258, %v2259
      %2293 = vadd.xlane.f32.xlu0 %v2292
      %v2294 = vpop.xlane.xlu0 %2293
      %v2295 = vadd.f32 %v2260, %v2261
      %2296 = vadd.xlane.f32.xlu0 %v2295
      %v2297 = vpop.xlane.xlu0 %2296
      %v2298 = vadd.f32 %v2262, %v2263
      %2299 = vadd.xlane.f32.xlu0 %v2298
      %v2300 = vpop.xlane.xlu0 %2299
      %v2301 = vadd.f32 %v2264, %v2265
      %2302 = vadd.xlane.f32.xlu0 %v2301
      %v2303 = vpop.xlane.xlu0 %2302
      %v2304 = vadd.f32 %v2266, %v2267
      %2305 = vadd.xlane.f32.xlu0 %v2304
      %v2306 = vpop.xlane.xlu0 %2305
      %v2307 = vadd.f32 %v2268, %v2269
      %2308 = vadd.xlane.f32.xlu0 %v2307
      %v2309 = vpop.xlane.xlu0 %2308
      %v2310 = vadd.f32 %v2270, %v2271
      %2311 = vadd.xlane.f32.xlu0 %v2310
      %v2312 = vpop.xlane.xlu0 %2311
      %v2313 = vadd.f32 %v2272, %v2273
      %2314 = vadd.xlane.f32.xlu0 %v2313
      %v2315 = vpop.xlane.xlu0 %2314
      %v2316 = vadd.f32 %v2274, %v2275
      %2317 = vadd.xlane.f32.xlu0 %v2316
      %v2318 = vpop.xlane.xlu0 %2317
      %v2319 = vadd.f32 %v2276, %v2277
      %2320 = vadd.xlane.f32.xlu0 %v2319
      %v2321 = vpop.xlane.xlu0 %2320
      %v2322 = vadd.f32 %v2278, %v2279
      %2323 = vadd.xlane.f32.xlu0 %v2322
      %v2324 = vpop.xlane.xlu0 %2323
      %v2325 = vadd.f32 %v2280, %v2281
      %2326 = vadd.xlane.f32.xlu0 %v2325
      %v2327 = vpop.xlane.xlu0 %2326
      %v2328 = vadd.f32 %v2282, %v2283
      %2329 = vadd.xlane.f32.xlu0 %v2328
      %v2330 = vpop.xlane.xlu0 %2329
      %v2331 = vadd.f32 %v2284, %v2285
      %2332 = vadd.xlane.f32.xlu0 %v2331
      %v2333 = vpop.xlane.xlu0 %2332
      %s2334 = sld [smem:[#allocation2]]
      %v2335 = vstv %s2334
      %v2336 = vadd.f32 %v2288, %v2335
      %v2337 = vadd.f32 %v2291, %v2335
      %v2338 = vadd.f32 %v2294, %v2335
      %v2339 = vadd.f32 %v2297, %v2335
      %v2340 = vadd.f32 %v2300, %v2335
      %v2341 = vadd.f32 %v2303, %v2335
      %v2342 = vadd.f32 %v2306, %v2335
      %v2343 = vadd.f32 %v2309, %v2335
      %v2344 = vadd.f32 %v2312, %v2335
      %v2345 = vadd.f32 %v2315, %v2335
      %v2346 = vadd.f32 %v2318, %v2335
      %v2347 = vadd.f32 %v2321, %v2335
      %v2348 = vadd.f32 %v2324, %v2335
      %v2349 = vadd.f32 %v2327, %v2335
      %v2350 = vadd.f32 %v2330, %v2335
      %v2351 = vadd.f32 %v2333, %v2335
      %v2352 = vsub.f32 0.0, %v2336
      %v2353 = vsub.f32 0.0, %v2337
      %v2354 = vsub.f32 0.0, %v2338
      %v2355 = vsub.f32 0.0, %v2339
      %v2356 = vsub.f32 0.0, %v2340
      %v2357 = vsub.f32 0.0, %v2341
      %v2358 = vsub.f32 0.0, %v2342
      %v2359 = vsub.f32 0.0, %v2343
      %v2360 = vsub.f32 0.0, %v2344
      %v2361 = vsub.f32 0.0, %v2345
      %v2362 = vsub.f32 0.0, %v2346
      %v2363 = vsub.f32 0.0, %v2347
      %v2364 = vsub.f32 0.0, %v2348
      %v2365 = vsub.f32 0.0, %v2349
      %v2366 = vsub.f32 0.0, %v2350
      %v2367 = vsub.f32 0.0, %v2351
      %v2368 = vmul.f32 %v2352, 1.442695
      %v2369 = vpow.pop %v2368
      %v2370 = vmul.f32 %v2353, 1.442695
      %v2371 = vpow.pop %v2370
      %v2372 = vmul.f32 %v2354, 1.442695
      %v2373 = vpow.pop %v2372
      %v2374 = vmul.f32 %v2355, 1.442695
      %v2375 = vpow.pop %v2374
      %v2376 = vmul.f32 %v2356, 1.442695
      %v2377 = vpow.pop %v2376
      %v2378 = vmul.f32 %v2357, 1.442695
      %v2379 = vpow.pop %v2378
      %v2380 = vmul.f32 %v2358, 1.442695
      %v2381 = vpow.pop %v2380
      %v2382 = vmul.f32 %v2359, 1.442695
      %v2383 = vpow.pop %v2382
      %v2384 = vmul.f32 %v2360, 1.442695
      %v2385 = vpow.pop %v2384
      %v2386 = vmul.f32 %v2361, 1.442695
      %v2387 = vpow.pop %v2386
      %v2388 = vmul.f32 %v2362, 1.442695
      %v2389 = vpow.pop %v2388
      %v2390 = vmul.f32 %v2363, 1.442695
      %v2391 = vpow.pop %v2390
      %v2392 = vmul.f32 %v2364, 1.442695
      %v2393 = vpow.pop %v2392
      %v2394 = vmul.f32 %v2365, 1.442695
      %v2395 = vpow.pop %v2394
      %v2396 = vmul.f32 %v2366, 1.442695
      %v2397 = vpow.pop %v2396
      %v2398 = vmul.f32 %v2367, 1.442695
      %v2399 = vpow.pop %v2398
      %v2400 = vadd.f32 %v2369, 1.0
      %v2401 = vadd.f32 %v2371, 1.0
      %v2402 = vadd.f32 %v2373, 1.0
      %v2403 = vadd.f32 %v2375, 1.0
      %v2404 = vadd.f32 %v2377, 1.0
      %v2405 = vadd.f32 %v2379, 1.0
      %v2406 = vadd.f32 %v2381, 1.0
      %v2407 = vadd.f32 %v2383, 1.0
      %v2408 = vadd.f32 %v2385, 1.0
      %v2409 = vadd.f32 %v2387, 1.0
      %v2410 = vadd.f32 %v2389, 1.0
      %v2411 = vadd.f32 %v2391, 1.0
      %v2412 = vadd.f32 %v2393, 1.0
      %v2413 = vadd.f32 %v2395, 1.0
      %v2414 = vadd.f32 %v2397, 1.0
      %v2415 = vadd.f32 %v2399, 1.0
      %v2416 = vrcp.pop %v2400
      %v2417 = vrcp.pop %v2401
      %v2418 = vrcp.pop %v2402
      %v2419 = vrcp.pop %v2403
      %v2420 = vrcp.pop %v2404
      %v2421 = vrcp.pop %v2405
      %v2422 = vrcp.pop %v2406
      %v2423 = vrcp.pop %v2407
      %v2424 = vrcp.pop %v2408
      %v2425 = vrcp.pop %v2409
      %v2426 = vrcp.pop %v2410
      %v2427 = vrcp.pop %v2411
      %v2428 = vrcp.pop %v2412
      %v2429 = vrcp.pop %v2413
      %v2430 = vrcp.pop %v2414
      %v2431 = vrcp.pop %v2415
      %vm2432 = vcmask 7168
      %2433 = vst.msk [vmem:[%s284] sm:$0xff] %vm2432, %v2416
      %2434 = vst.msk [vmem:[%s284 + $0x8] sm:$0xff] %vm2432, %v2417
      %2435 = vst.msk [vmem:[%s284 + $0x10] sm:$0xff] %vm2432, %v2418
      %2436 = vst.msk [vmem:[%s284 + $0x18] sm:$0xff] %vm2432, %v2419
      %2437 = vst.msk [vmem:[%s284 + $0x20] sm:$0xff] %vm2432, %v2420
      %2438 = vst.msk [vmem:[%s284 + $0x28] sm:$0xff] %vm2432, %v2421
      %2439 = vst.msk [vmem:[%s284 + $0x30] sm:$0xff] %vm2432, %v2422
      %2440 = vst.msk [vmem:[%s284 + $0x38] sm:$0xff] %vm2432, %v2423
      %2441 = vst.msk [vmem:[%s284 + $0x40] sm:$0xff] %vm2432, %v2424
      %2442 = vst.msk [vmem:[%s284 + $0x48] sm:$0xff] %vm2432, %v2425
      %2443 = vst.msk [vmem:[%s284 + $0x50] sm:$0xff] %vm2432, %v2426
      %2444 = vst.msk [vmem:[%s284 + $0x58] sm:$0xff] %vm2432, %v2427
      %2445 = vst.msk [vmem:[%s284 + $0x60] sm:$0xff] %vm2432, %v2428
      %2446 = vst.msk [vmem:[%s284 + $0x68] sm:$0xff] %vm2432, %v2429
      %2447 = vst.msk [vmem:[%s284 + $0x70] sm:$0xff] %vm2432, %v2430
      %2448 = vst.msk [vmem:[%s284 + $0x78] sm:$0xff] %vm2432, %v2431
      %s2449 = smul.u32 16, %s19
      %p2450 = scmp.lt.s32.totalorder %s2449, 47
      %s2451 = scalar_select %p2450, %s2449, 47
      %s2452 = smul.addr %s2451, 8
      %s2453 = scalar_lea.vmem %s7, %s2452
      // Predicated region
      $region49: #{tpu_custom_call.1} parent=47 // pred_check
        %p2454 = pneg %p189
      $region50: #{tpu_custom_call.1} parent=47 // pred_check_branch
        %2456 = sbr.rel (%p2454) target = $region52
      $region51: #{tpu_custom_call.1} parent=47 // pred_region
        %s2457 = smul.u32 16, %s19
      $region52: #{tpu_custom_call.1} parent=47 // pred_fallthru
        _
    $region48: #{tpu_custom_call.1} parent=5 // pred_fallthru
      _
    %p2458 = scmp.le.s32.totalorder 2, %s14
    // Predicated region
    $region53: #{tpu_custom_call.1} parent=5 // pred_check
      %p2459 = pneg %p2458
    $region54: #{tpu_custom_call.1} parent=5 // pred_check_branch
      %2461 = sbr.rel (%p2459) target = $region56
    $region55: #{tpu_custom_call.1} parent=5 // pred_region
      %s2462 = ssub.s32 %s14, 2
      // Predicated region
      $region57: #{tpu_custom_call.1} parent=55 // pred_check
        %p2463 = pneg %p195
      $region58: #{tpu_custom_call.1} parent=55 // pred_check_branch
        %2465 = sbr.rel (%p2463) target = $region60
      $region59: #{tpu_custom_call.1} parent=55 // pred_region
        %s2466 = smul.u32 16, %s20
        %p2467 = scmp.lt.s32.totalorder %s2466, 47
        %s2468 = scalar_select %p2467, %s2466, 47
        %s2469 = smul.addr %s2468, 8
        %s2470 = scalar_lea.vmem %s7, %s2469
      $region60: #{tpu_custom_call.1} parent=55 // pred_fallthru
        _
    $region56: #{tpu_custom_call.1} parent=5 // pred_fallthru
      _
  $region6: #{tpu_custom_call.1} parent=0 // loop_footer
    %s18 = sadd.s32 1, %s14
  $region7: #{tpu_custom_call.1} parent=0 // loop_footer_branch
    %13 = sbr.rel target = $region3
  $region8: #{tpu_custom_call.1} parent=0 // loop_exit
    _

</llo_original>
